<compile_context>
chip_gen: v7x
topology: tpu7x:2x2x1
jax: 0.10.0
libtpu: 0.0.40
codegen_flags: <defaults>
</compile_context>

<pallas_src>
import jax
import jax.numpy as jnp
from jax.experimental import pallas as pl
from jax.experimental.pallas import tpu as pltpu

EPS = 1e-5


def _mlp_kernel(x_ref,
                w1_ref, g1_ref, be1_ref,
                w2_hbm, g2_ref, be2_ref,
                w3_hbm, g3_ref, be3_ref,
                w4_ref, b4_ref,
                out_ref,
                w2_vmem, w3_vmem, dma_sems):
    """Whole forward pass in one kernel invocation (everything fits VMEM)."""

    # Kick off w2/w3 HBM->VMEM prefetches immediately so their DMA overlaps
    # the fc1 (and fc2) compute instead of being paid up front.
    w2_cp = pltpu.make_async_copy(w2_hbm, w2_vmem, dma_sems.at[0])
    w3_cp = pltpu.make_async_copy(w3_hbm, w3_vmem, dma_sems.at[1])
    w2_cp.start()
    w3_cp.start()

    def bn_relu(h, g, be):
        # Training-mode BatchNorm1d folded into scale/shift, two-pass variance.
        mean = jnp.mean(h, axis=0, keepdims=True)
        c = h - mean
        var = jnp.mean(c * c, axis=0, keepdims=True)
        scale = g * jax.lax.rsqrt(var + EPS)
        return jnp.maximum(c * scale + be, 0.0)

    # x arrives f32; cast to bf16 in-kernel (feeds the MXU at half width
    # without an extra wrapper-side HBM pass).
    x = x_ref[...].astype(jnp.bfloat16)                    # (B, 1024) bf16

    # fc1 (bias cancelled by BN) -> bn1 -> relu
    h = jnp.dot(x, w1_ref[...], preferred_element_type=jnp.float32)
    h = bn_relu(h, g1_ref[...], be1_ref[...])              # (B, 512) f32

    # fc2 -> bn2 -> relu  (wait for w2 only now; its DMA ran under fc1)
    w2_cp.wait()
    h = jnp.dot(h.astype(jnp.bfloat16), w2_vmem[...],
                preferred_element_type=jnp.float32)
    h = bn_relu(h, g2_ref[...], be2_ref[...])              # (B, 256) f32

    # fc3 -> bn3 -> relu  (w3 DMA ran under fc1/fc2)
    w3_cp.wait()
    h = jnp.dot(h.astype(jnp.bfloat16), w3_vmem[...],
                preferred_element_type=jnp.float32)
    h = bn_relu(h, g3_ref[...], be3_ref[...])              # (B, 128) f32

    # fc4: out_features == 1 -> lane reduction (w4 stored as (1, 128) f32).
    logits = jnp.sum(h * w4_ref[...], axis=1, keepdims=True) + b4_ref[...]
    out_ref[...] = jax.nn.sigmoid(logits)                  # (B, 1) f32


def destructor_domain_forward(x, params):
    """x: (B, C, H, W) with C*H*W == 1024. Returns (B, 1) sigmoid scores."""
    B = x.shape[0]
    x2d = x.reshape(B, -1)                                 # view(B, -1); stays f32

    args = (
        x2d,
        params["w1"], params["g1"], params["be1"],
        params["w2"], params["g2"], params["be2"],
        params["w3"], params["g3"], params["be3"],
        params["w4"], params["b4"],
    )
    vmem = pl.BlockSpec(memory_space=pltpu.MemorySpace.VMEM)
    hbm = pl.BlockSpec(memory_space=pl.ANY)                # manual-DMA inputs
    in_specs = [
        vmem,                    # x
        vmem, vmem, vmem,        # w1, g1, be1
        hbm, vmem, vmem,         # w2 (prefetched in-kernel), g2, be2
        hbm, vmem, vmem,         # w3 (prefetched in-kernel), g3, be3
        vmem, vmem,              # w4, b4
    ]

    flops = 2 * B * (1024 * 512 + 512 * 256 + 256 * 128 + 128)
    bytes_accessed = sum(int(a.size) * a.dtype.itemsize for a in args) + B * 4
    cost = pl.CostEstimate(flops=flops,
                           transcendentals=B + 512 + 256 + 128,
                           bytes_accessed=bytes_accessed)

    return pl.pallas_call(
        _mlp_kernel,
        out_shape=jax.ShapeDtypeStruct((B, 1), jnp.float32),
        in_specs=in_specs,
        out_specs=pl.BlockSpec(memory_space=pltpu.MemorySpace.VMEM),
        scratch_shapes=[
            pltpu.VMEM((512, 256), jnp.bfloat16),          # w2 landing buffer
            pltpu.VMEM((256, 128), jnp.bfloat16),          # w3 landing buffer
            pltpu.SemaphoreType.DMA((2,)),
        ],
        compiler_params=pltpu.CompilerParams(
            vmem_limit_bytes=4 * 1024 * 1024),             # footprint ~1.6 MiB
        cost_estimate=cost,
    )(*args)
    # TODO(synk): if this forward is called repeatedly (esp. v7x, where launch
    # overhead > weight DMA), keep weights resident via a cross-call prefetch
    # (P10: start the weight DMA in a prior pallas_call, return sem + VMEM ref).
    # TODO(synk): for large B, add a leading "parallel" batch grid axis with a
    # two-pass BN (stats pass + normalize pass), a 512-1024 row batch block
    # (re-derived for v7x's 64 MiB VMEM), and a lane-dense (1, B) output slab.


def init_params(key):
    """Deterministic synthetic parameters matching the PyTorch shapes.

    Linear weights are stored as (in_features, out_features); fc1-fc3 biases
    are omitted because training-mode BN cancels them exactly.
    """
    dims = [(1024, 512), (512, 256), (256, 128), (128, 1)]
    keys = jax.random.split(key, 2 * len(dims))
    p = {}
    for i, (fin, fout) in enumerate(dims, start=1):
        bound = 1.0 / (fin ** 0.5)
        w = jax.random.uniform(keys[2 * (i - 1)], (fin, fout),
                               jnp.float32, -bound, bound)
        b = jax.random.uniform(keys[2 * (i - 1) + 1], (1, fout),
                               jnp.float32, -bound, bound)
        if i == 4:
            p["w4"] = w.reshape(1, fin)            # (1, 128) f32 for lane-reduce
            p["b4"] = b                            # (1, 1) f32
        else:
            p[f"w{i}"] = w.astype(jnp.bfloat16)    # bf16 weight for the MXU
            p[f"g{i}"] = jnp.ones((1, fout), jnp.float32)    # BN gamma
            p[f"be{i}"] = jnp.zeros((1, fout), jnp.float32)  # BN beta
    return p


def _bn_relu_ref(h, g, be):
    m = jnp.mean(h, axis=0, keepdims=True)
    c = h - m
    v = jnp.mean(c * c, axis=0, keepdims=True)
    return jnp.maximum(c * (g * jax.lax.rsqrt(v + EPS)) + be, 0.0)


def _reference_bf16(x, p):
    """Pure-JAX reference mirroring the kernel's math (bf16 dots, f32 BN)."""
    h = x.reshape(x.shape[0], -1).astype(jnp.bfloat16)
    h = _bn_relu_ref(jnp.dot(h, p["w1"], preferred_element_type=jnp.float32),
                     p["g1"], p["be1"])
    h = _bn_relu_ref(jnp.dot(h.astype(jnp.bfloat16), p["w2"],
                             preferred_element_type=jnp.float32),
                     p["g2"], p["be2"])
    h = _bn_relu_ref(jnp.dot(h.astype(jnp.bfloat16), p["w3"],
                             preferred_element_type=jnp.float32),
                     p["g3"], p["be3"])
    return jax.nn.sigmoid(jnp.sum(h * p["w4"], axis=1, keepdims=True) + p["b4"])


def _reference_f32(x, p):
    """Full-f32 forward (same parameter values) — non-circular accuracy check."""
    h = x.reshape(x.shape[0], -1)
    h = _bn_relu_ref(jnp.dot(h, p["w1"].astype(jnp.float32)), p["g1"], p["be1"])
    h = _bn_relu_ref(jnp.dot(h, p["w2"].astype(jnp.float32)), p["g2"], p["be2"])
    h = _bn_relu_ref(jnp.dot(h, p["w3"].astype(jnp.float32)), p["g3"], p["be3"])
    return jax.nn.sigmoid(jnp.sum(h * p["w4"], axis=1, keepdims=True) + p["b4"])


if __name__ == "__main__":
    key = jax.random.PRNGKey(0)
    kx, kp = jax.random.split(key)

    # (B, C, H, W) with C*H*W = 4*16*16 = 1024, as fc1's input size implies.
    x = jax.random.normal(kx, (8, 4, 16, 16), jnp.float32)
    params = init_params(kp)

    out = destructor_domain_forward(x, params)
    out = jax.block_until_ready(out)

    assert out.shape == (8, 1)
    assert bool(jnp.all(jnp.isfinite(out)))

    # Tight check vs. a reference that mirrors the kernel's own bf16 math.
    ref_bf16 = _reference_bf16(x, params)
    assert jnp.allclose(out, ref_bf16, atol=2e-4, rtol=2e-4)

    # Looser explicit-tolerance check vs. a full-f32 forward (bounds the
    # bf16-activation / bf16-matmul deviation from an f32 PyTorch forward).
    ref_f32 = _reference_f32(x, params)
    assert jnp.allclose(out, ref_f32, atol=2e-2)

    print("KERNEL_OK")
</pallas_src>

<mosaic_0001>
module attributes {stable_mosaic.version = 11 : i64} {
  func.func @_mlp_kernel(%arg0: memref<8x1024xf32, #tpu.memory_space<vmem>>, %arg1: memref<1024x512xbf16, #tpu.memory_space<vmem>>, %arg2: memref<1x512xf32, #tpu.memory_space<vmem>>, %arg3: memref<1x512xf32, #tpu.memory_space<vmem>>, %arg4: memref<512x256xbf16, #tpu.memory_space<any>>, %arg5: memref<1x256xf32, #tpu.memory_space<vmem>>, %arg6: memref<1x256xf32, #tpu.memory_space<vmem>>, %arg7: memref<256x128xbf16, #tpu.memory_space<any>>, %arg8: memref<1x128xf32, #tpu.memory_space<vmem>>, %arg9: memref<1x128xf32, #tpu.memory_space<vmem>>, %arg10: memref<1x128xf32, #tpu.memory_space<vmem>>, %arg11: memref<1x1xf32, #tpu.memory_space<vmem>>, %arg12: memref<8x1xf32, #tpu.memory_space<vmem>>, %arg13: memref<512x256xbf16, #tpu.memory_space<vmem>>, %arg14: memref<256x128xbf16, #tpu.memory_space<vmem>>, %arg15: memref<2x!tpu.dma_semaphore, #tpu.memory_space<semaphore_mem>>) attributes {dimension_semantics = [], scalar_prefetch = 0 : i64, scratch_operands = 3 : i64, tpu.core_type = #tpu.core_type<tc>} {
    %c0_i32 = arith.constant 0 : i32
    %0 = tpu.memref_slice %arg15[%c0_i32] : memref<2x!tpu.dma_semaphore, #tpu.memory_space<semaphore_mem>> -> memref<1x!tpu.dma_semaphore, #tpu.memory_space<semaphore_mem>>
    %1 = tpu.memref_squeeze %0 : memref<1x!tpu.dma_semaphore, #tpu.memory_space<semaphore_mem>> -> memref<!tpu.dma_semaphore, #tpu.memory_space<semaphore_mem>>
    tpu.enqueue_dma source(%arg4 : memref<512x256xbf16, #tpu.memory_space<any>>) target(%arg13 : memref<512x256xbf16, #tpu.memory_space<vmem>>) target_semaphore(%1 : memref<!tpu.dma_semaphore, #tpu.memory_space<semaphore_mem>>)
    %c1_i32 = arith.constant 1 : i32
    %2 = tpu.memref_slice %arg15[%c1_i32] : memref<2x!tpu.dma_semaphore, #tpu.memory_space<semaphore_mem>> -> memref<1x!tpu.dma_semaphore, #tpu.memory_space<semaphore_mem>>
    %3 = tpu.memref_squeeze %2 : memref<1x!tpu.dma_semaphore, #tpu.memory_space<semaphore_mem>> -> memref<!tpu.dma_semaphore, #tpu.memory_space<semaphore_mem>>
    tpu.enqueue_dma source(%arg7 : memref<256x128xbf16, #tpu.memory_space<any>>) target(%arg14 : memref<256x128xbf16, #tpu.memory_space<vmem>>) target_semaphore(%3 : memref<!tpu.dma_semaphore, #tpu.memory_space<semaphore_mem>>)
    %c0 = arith.constant 0 : index
    %c0_0 = arith.constant 0 : index
    %4 = vector.load %arg0[%c0, %c0_0] : memref<8x1024xf32, #tpu.memory_space<vmem>>, vector<8x1024xf32>
    %5 = arith.truncf %4 : vector<8x1024xf32> to vector<8x1024xbf16>
    %c0_1 = arith.constant 0 : index
    %c0_2 = arith.constant 0 : index
    %6 = vector.load %arg1[%c0_1, %c0_2] : memref<1024x512xbf16, #tpu.memory_space<vmem>>, vector<1024x512xbf16>
    %cst = arith.constant dense<0.000000e+00> : vector<8x512xf32>
    %7 = tpu.matmul %5, %6, %cst {dimension_numbers = #tpu.dot_dimension_numbers<[1], [0], [0], [1], [0, 0, 1, 1], [], []>} : vector<8x1024xbf16>, vector<1024x512xbf16>, vector<8x512xf32> -> vector<8x512xf32>
    %c0_3 = arith.constant 0 : index
    %c0_4 = arith.constant 0 : index
    %8 = vector.load %arg2[%c0_3, %c0_4] : memref<1x512xf32, #tpu.memory_space<vmem>>, vector<1x512xf32>
    %c0_5 = arith.constant 0 : index
    %c0_6 = arith.constant 0 : index
    %9 = vector.load %arg3[%c0_5, %c0_6] : memref<1x512xf32, #tpu.memory_space<vmem>>, vector<1x512xf32>
    %cst_7 = arith.constant dense<0.000000e+00> : vector<512xf32>
    %10 = vector.multi_reduction <add>, %7, %cst_7 [0] : vector<8x512xf32> to vector<512xf32>
    %11 = vector.shape_cast %10 : vector<512xf32> to vector<1x512xf32>
    %cst_8 = arith.constant 8.000000e+00 : f32
    %12 = vector.broadcast %cst_8 : f32 to vector<1x512xf32>
    %13 = arith.divf %11, %12 : vector<1x512xf32>
    %14 = vector.broadcast %13 : vector<1x512xf32> to vector<8x512xf32>
    %15 = arith.subf %7, %14 : vector<8x512xf32>
    %16 = arith.mulf %15, %15 : vector<8x512xf32>
    %cst_9 = arith.constant dense<0.000000e+00> : vector<512xf32>
    %17 = vector.multi_reduction <add>, %16, %cst_9 [0] : vector<8x512xf32> to vector<512xf32>
    %18 = vector.shape_cast %17 : vector<512xf32> to vector<1x512xf32>
    %cst_10 = arith.constant 8.000000e+00 : f32
    %19 = vector.broadcast %cst_10 : f32 to vector<1x512xf32>
    %20 = arith.divf %18, %19 : vector<1x512xf32>
    %cst_11 = arith.constant 9.99999974E-6 : f32
    %21 = vector.broadcast %cst_11 : f32 to vector<1x512xf32>
    %22 = arith.addf %20, %21 : vector<1x512xf32>
    %23 = math.rsqrt %22 : vector<1x512xf32>
    %24 = arith.mulf %8, %23 : vector<1x512xf32>
    %25 = vector.broadcast %24 : vector<1x512xf32> to vector<8x512xf32>
    %26 = arith.mulf %15, %25 : vector<8x512xf32>
    %27 = vector.broadcast %9 : vector<1x512xf32> to vector<8x512xf32>
    %28 = arith.addf %26, %27 : vector<8x512xf32>
    %cst_12 = arith.constant 0.000000e+00 : f32
    %29 = vector.broadcast %cst_12 : f32 to vector<8x512xf32>
    %30 = arith.maximumf %28, %29 : vector<8x512xf32>
    %c0_i32_13 = arith.constant 0 : i32
    %31 = tpu.memref_slice %arg15[%c0_i32_13] : memref<2x!tpu.dma_semaphore, #tpu.memory_space<semaphore_mem>> -> memref<1x!tpu.dma_semaphore, #tpu.memory_space<semaphore_mem>>
    %32 = tpu.memref_squeeze %31 : memref<1x!tpu.dma_semaphore, #tpu.memory_space<semaphore_mem>> -> memref<!tpu.dma_semaphore, #tpu.memory_space<semaphore_mem>>
    tpu.wait_dma2 semaphore(%32 : memref<!tpu.dma_semaphore, #tpu.memory_space<semaphore_mem>>) src(%arg4 : memref<512x256xbf16, #tpu.memory_space<any>>) dst(%arg13 : memref<512x256xbf16, #tpu.memory_space<vmem>>)
    %33 = arith.truncf %30 : vector<8x512xf32> to vector<8x512xbf16>
    %c0_14 = arith.constant 0 : index
    %c0_15 = arith.constant 0 : index
    %34 = vector.load %arg13[%c0_14, %c0_15] : memref<512x256xbf16, #tpu.memory_space<vmem>>, vector<512x256xbf16>
    %cst_16 = arith.constant dense<0.000000e+00> : vector<8x256xf32>
    %35 = tpu.matmul %33, %34, %cst_16 {dimension_numbers = #tpu.dot_dimension_numbers<[1], [0], [0], [1], [0, 0, 1, 1], [], []>} : vector<8x512xbf16>, vector<512x256xbf16>, vector<8x256xf32> -> vector<8x256xf32>
    %c0_17 = arith.constant 0 : index
    %c0_18 = arith.constant 0 : index
    %36 = vector.load %arg5[%c0_17, %c0_18] : memref<1x256xf32, #tpu.memory_space<vmem>>, vector<1x256xf32>
    %c0_19 = arith.constant 0 : index
    %c0_20 = arith.constant 0 : index
    %37 = vector.load %arg6[%c0_19, %c0_20] : memref<1x256xf32, #tpu.memory_space<vmem>>, vector<1x256xf32>
    %cst_21 = arith.constant dense<0.000000e+00> : vector<256xf32>
    %38 = vector.multi_reduction <add>, %35, %cst_21 [0] : vector<8x256xf32> to vector<256xf32>
    %39 = vector.shape_cast %38 : vector<256xf32> to vector<1x256xf32>
    %cst_22 = arith.constant 8.000000e+00 : f32
    %40 = vector.broadcast %cst_22 : f32 to vector<1x256xf32>
    %41 = arith.divf %39, %40 : vector<1x256xf32>
    %42 = vector.broadcast %41 : vector<1x256xf32> to vector<8x256xf32>
    %43 = arith.subf %35, %42 : vector<8x256xf32>
    %44 = arith.mulf %43, %43 : vector<8x256xf32>
    %cst_23 = arith.constant dense<0.000000e+00> : vector<256xf32>
    %45 = vector.multi_reduction <add>, %44, %cst_23 [0] : vector<8x256xf32> to vector<256xf32>
    %46 = vector.shape_cast %45 : vector<256xf32> to vector<1x256xf32>
    %cst_24 = arith.constant 8.000000e+00 : f32
    %47 = vector.broadcast %cst_24 : f32 to vector<1x256xf32>
    %48 = arith.divf %46, %47 : vector<1x256xf32>
    %cst_25 = arith.constant 9.99999974E-6 : f32
    %49 = vector.broadcast %cst_25 : f32 to vector<1x256xf32>
    %50 = arith.addf %48, %49 : vector<1x256xf32>
    %51 = math.rsqrt %50 : vector<1x256xf32>
    %52 = arith.mulf %36, %51 : vector<1x256xf32>
    %53 = vector.broadcast %52 : vector<1x256xf32> to vector<8x256xf32>
    %54 = arith.mulf %43, %53 : vector<8x256xf32>
    %55 = vector.broadcast %37 : vector<1x256xf32> to vector<8x256xf32>
    %56 = arith.addf %54, %55 : vector<8x256xf32>
    %cst_26 = arith.constant 0.000000e+00 : f32
    %57 = vector.broadcast %cst_26 : f32 to vector<8x256xf32>
    %58 = arith.maximumf %56, %57 : vector<8x256xf32>
    %c1_i32_27 = arith.constant 1 : i32
    %59 = tpu.memref_slice %arg15[%c1_i32_27] : memref<2x!tpu.dma_semaphore, #tpu.memory_space<semaphore_mem>> -> memref<1x!tpu.dma_semaphore, #tpu.memory_space<semaphore_mem>>
    %60 = tpu.memref_squeeze %59 : memref<1x!tpu.dma_semaphore, #tpu.memory_space<semaphore_mem>> -> memref<!tpu.dma_semaphore, #tpu.memory_space<semaphore_mem>>
    tpu.wait_dma2 semaphore(%60 : memref<!tpu.dma_semaphore, #tpu.memory_space<semaphore_mem>>) src(%arg7 : memref<256x128xbf16, #tpu.memory_space<any>>) dst(%arg14 : memref<256x128xbf16, #tpu.memory_space<vmem>>)
    %61 = arith.truncf %58 : vector<8x256xf32> to vector<8x256xbf16>
    %c0_28 = arith.constant 0 : index
    %c0_29 = arith.constant 0 : index
    %62 = vector.load %arg14[%c0_28, %c0_29] : memref<256x128xbf16, #tpu.memory_space<vmem>>, vector<256x128xbf16>
    %cst_30 = arith.constant dense<0.000000e+00> : vector<8x128xf32>
    %63 = tpu.matmul %61, %62, %cst_30 {dimension_numbers = #tpu.dot_dimension_numbers<[1], [0], [0], [1], [0, 0, 1, 1], [], []>} : vector<8x256xbf16>, vector<256x128xbf16>, vector<8x128xf32> -> vector<8x128xf32>
    %c0_31 = arith.constant 0 : index
    %c0_32 = arith.constant 0 : index
    %64 = vector.load %arg8[%c0_31, %c0_32] : memref<1x128xf32, #tpu.memory_space<vmem>>, vector<1x128xf32>
    %c0_33 = arith.constant 0 : index
    %c0_34 = arith.constant 0 : index
    %65 = vector.load %arg9[%c0_33, %c0_34] : memref<1x128xf32, #tpu.memory_space<vmem>>, vector<1x128xf32>
    %cst_35 = arith.constant dense<0.000000e+00> : vector<128xf32>
    %66 = vector.multi_reduction <add>, %63, %cst_35 [0] : vector<8x128xf32> to vector<128xf32>
    %67 = vector.shape_cast %66 : vector<128xf32> to vector<1x128xf32>
    %cst_36 = arith.constant 8.000000e+00 : f32
    %68 = vector.broadcast %cst_36 : f32 to vector<1x128xf32>
    %69 = arith.divf %67, %68 : vector<1x128xf32>
    %70 = vector.broadcast %69 : vector<1x128xf32> to vector<8x128xf32>
    %71 = arith.subf %63, %70 : vector<8x128xf32>
    %72 = arith.mulf %71, %71 : vector<8x128xf32>
    %cst_37 = arith.constant dense<0.000000e+00> : vector<128xf32>
    %73 = vector.multi_reduction <add>, %72, %cst_37 [0] : vector<8x128xf32> to vector<128xf32>
    %74 = vector.shape_cast %73 : vector<128xf32> to vector<1x128xf32>
    %cst_38 = arith.constant 8.000000e+00 : f32
    %75 = vector.broadcast %cst_38 : f32 to vector<1x128xf32>
    %76 = arith.divf %74, %75 : vector<1x128xf32>
    %cst_39 = arith.constant 9.99999974E-6 : f32
    %77 = vector.broadcast %cst_39 : f32 to vector<1x128xf32>
    %78 = arith.addf %76, %77 : vector<1x128xf32>
    %79 = math.rsqrt %78 : vector<1x128xf32>
    %80 = arith.mulf %64, %79 : vector<1x128xf32>
    %81 = vector.broadcast %80 : vector<1x128xf32> to vector<8x128xf32>
    %82 = arith.mulf %71, %81 : vector<8x128xf32>
    %83 = vector.broadcast %65 : vector<1x128xf32> to vector<8x128xf32>
    %84 = arith.addf %82, %83 : vector<8x128xf32>
    %cst_40 = arith.constant 0.000000e+00 : f32
    %85 = vector.broadcast %cst_40 : f32 to vector<8x128xf32>
    %86 = arith.maximumf %84, %85 : vector<8x128xf32>
    %c0_41 = arith.constant 0 : index
    %c0_42 = arith.constant 0 : index
    %87 = vector.load %arg10[%c0_41, %c0_42] : memref<1x128xf32, #tpu.memory_space<vmem>>, vector<1x128xf32>
    %88 = vector.broadcast %87 : vector<1x128xf32> to vector<8x128xf32>
    %89 = arith.mulf %86, %88 : vector<8x128xf32>
    %cst_43 = arith.constant dense<0.000000e+00> : vector<8xf32>
    %90 = vector.multi_reduction <add>, %89, %cst_43 [1] : vector<8x128xf32> to vector<8xf32>
    %91 = vector.shape_cast %90 : vector<8xf32> to vector<8x1xf32>
    %c0_44 = arith.constant 0 : index
    %c0_45 = arith.constant 0 : index
    %92 = vector.load %arg11[%c0_44, %c0_45] : memref<1x1xf32, #tpu.memory_space<vmem>>, vector<1x1xf32>
    %93 = vector.broadcast %92 : vector<1x1xf32> to vector<8x1xf32>
    %94 = arith.addf %91, %93 : vector<8x1xf32>
    %95 = arith.negf %94 : vector<8x1xf32>
    %96 = math.exp %95 : vector<8x1xf32>
    %cst_46 = arith.constant 1.000000e+00 : f32
    %97 = vector.broadcast %cst_46 : f32 to vector<8x1xf32>
    %98 = arith.addf %97, %96 : vector<8x1xf32>
    %99 = arith.divf %97, %98 : vector<8x1xf32>
    %c0_47 = arith.constant 0 : index
    %c0_48 = arith.constant 0 : index
    %100 = vector.load %arg12[%c0_47, %c0_48] : memref<8x1xf32, #tpu.memory_space<vmem>>, vector<8x1xf32>
    tpu.vector_store %arg12[%c0_47, %c0_48], %99 {strides = array<i32>} : memref<8x1xf32, #tpu.memory_space<vmem>>, vector<8x1xf32>,
    return
  }
}

</mosaic_0001>

<llo_original>
// kernel: tpu_custom_call.1
$region0: #{tpu_custom_call.1}
  #allocation0 [shape = 'u32[]', space=smem, size = 0x4, offset = 0x4, fixed_abs, tag = 'smem constant byte address 0x4 - core index']
  #allocation1 [shape = 'u32[144,128]{1,0:T(1,128)}', space=vmem, size = 0x12000, scoped, tag = 'internal scratch']
  #allocation2 [shape = 'bf16[512,256]{1,0:T(16,128)(2,1)}', space=vmem, size = 0x40000, scoped, tag = 'scratch operand']
  #allocation3 [shape = 'bf16[256,128]{1,0:T(16,128)(2,1)}', space=vmem, size = 0x10000, scoped, tag = 'scratch operand']
  #allocation4 [shape = 's32[2]{0}', space=sflag, size = 0x8, scoped, tag = 'scratch operand']
  #allocation5 [shape = 'f32[1,1]{1,0:T(1,128)S(1)}', space=vmem, size = 0x200, scoped, tag = 'scoped memory for tpu_custom_call.1']
  #allocation10 [shape = 's32[]', space=sflag, size = 0x4, offset = 0, fixed_abs, tag = 'sflag constant byte address 0x0 - dummy sync flag']
  #allocation12 [shape = 's32[]', space=sflag, size = 0x4, offset = 0, fixed_abs, tag = 'sflag constant byte address 0x0 - dummy sync flag']
  #allocation13 [shape = 's32[]', space=sflag, size = 0x4, offset = 0, fixed_abs, tag = 'sflag constant byte address 0x0 - dummy sync flag']
  #allocation14 [shape = 'u32[]', space=smem, size = 0x4, offset = 0x44, fixed_abs, tag = 'smem constant byte address 0x44 - assertion arg 0']
  #allocation15 [shape = 'u32[]', space=smem, size = 0x4, offset = 0x48, fixed_abs, tag = 'smem constant byte address 0x48 - assertion arg 1']
  %s0 = inlined_call_operand.hbm [shape: f32[8,1024], index: 0, kind: input, shape index: {}]
  %s1 = inlined_call_operand.hbm [shape: bf16[1024,512], index: 1, kind: input, shape index: {}]
  %s2 = inlined_call_operand.vmem [shape: f32[1,512], index: 2, kind: input, shape index: {}]
  %s3 = inlined_call_operand.vmem [shape: f32[1,512], index: 3, kind: input, shape index: {}]
  %s4 = inlined_call_operand.hbm [shape: bf16[512,256], index: 4, kind: input, shape index: {}]
  %s5 = inlined_call_operand.vmem [shape: f32[1,256], index: 5, kind: input, shape index: {}]
  %s6 = inlined_call_operand.vmem [shape: f32[1,256], index: 6, kind: input, shape index: {}]
  %s7 = inlined_call_operand.hbm [shape: bf16[256,128], index: 7, kind: input, shape index: {}]
  %s8 = inlined_call_operand.vmem [shape: f32[1,128], index: 8, kind: input, shape index: {}]
  %s9 = inlined_call_operand.vmem [shape: f32[1,128], index: 9, kind: input, shape index: {}]
  %s10 = inlined_call_operand.vmem [shape: f32[1,128], index: 10, kind: input, shape index: {}]
  %s11 = inlined_call_operand.<no memory space> [shape: f32[1,1], index: 11, kind: input, shape index: {}]
  %s12 = inlined_call_operand.vmem [shape: f32[8,1], index: 12, kind: output, shape index: {}]
  %s13 = sld [smem:[#allocation0]]
  $region62: #{tpu_custom_call.1} parent=0
    _
  %s15 = ssub.s32 1, %s13
  %s16 = scalar_select 0, %s15, %s13
  %v17 = vstv %s11
  %18 = vst [vmem:[#allocation5] sm:$0x1] %v17
  $region1: #{tpu_custom_call.1} parent=0
    #allocation6 [shape = 'u8[32768]{0}', space=vmem, size = 0x8000, scoped, tag = 'input window, operand 0, single buffered']
    #allocation7 [shape = 's32[1]{0}', space=sflag, size = 0x4, scoped, tag = 'scoped memory for tpu_custom_call.1']
    #allocation8 [shape = 'u8[1048576]{0}', space=vmem, size = 0x100000, scoped, tag = 'input window, operand 1, single buffered']
    #allocation9 [shape = 's32[1]{0}', space=sflag, size = 0x4, scoped, tag = 'scoped memory for tpu_custom_call.1']
    #allocation11 [shape = 'u32[9]{0}', space=smem, size = 0x24, scoped, tag = 'DMA stride descriptor']
    %19 = vsyncpa [#allocation7], 0
    %20 = vsyncpa [#allocation9], 0
    // Predicated region
    $region2: #{tpu_custom_call.1} parent=1 // pred_check
      _
    $region3: #{tpu_custom_call.1} parent=1 // pred_check_branch
      %22 = sbr.rel (0) target = $region5
    $region4: #{tpu_custom_call.1} parent=1 // pred_region
      %s24 = ssub.s32 1024, 1024
      %25 = vsyncadd [#allocation7], %s24
      %s27 = sshll.u32 [#allocation6], 4
      %s28 = int_to_ptr.vmem [resolvable:$true] %s27
      %30 = dma.hbm_to_vmem [thread:$0]  %s0, 1024, %s28, [#allocation7]
    $region5: #{tpu_custom_call.1} parent=1 // pred_fallthru
      _
    // Predicated region
    $region6: #{tpu_custom_call.1} parent=1 // pred_check
      _
    $region7: #{tpu_custom_call.1} parent=1 // pred_check_branch
      %32 = sbr.rel (0) target = $region9
    $region8: #{tpu_custom_call.1} parent=1 // pred_region
      %s34 = ssub.s32 32768, 32768
      %35 = vsyncadd [#allocation9], %s34
      %s36 = sshll.u32 [#allocation8], 4
      %s37 = int_to_ptr.vmem [resolvable:$true] %s36
      %42 = dma.hbm_to_vmem [thread:$0]  %s1, 32768, %s37, [#allocation9], 256, 256, 16
    $region9: #{tpu_custom_call.1} parent=1 // pred_fallthru
      _
    // Predicated region
    $region10: #{tpu_custom_call.1} parent=1 // pred_check
      _
    $region11: #{tpu_custom_call.1} parent=1 // pred_check_branch
      %44 = sbr.rel (0) target = $region13
    $region12: #{tpu_custom_call.1} parent=1 // pred_region
      _
    $region13: #{tpu_custom_call.1} parent=1 // pred_fallthru
      _
    // Predicated region
    $region14: #{tpu_custom_call.1} parent=1 // pred_check
      _
    $region15: #{tpu_custom_call.1} parent=1 // pred_check_branch
      %46 = sbr.rel (0) target = $region17
    $region16: #{tpu_custom_call.1} parent=1 // pred_region
      _
    $region17: #{tpu_custom_call.1} parent=1 // pred_fallthru
      _
    // Predicated region
    $region18: #{tpu_custom_call.1} parent=1 // pred_check
      _
    $region19: #{tpu_custom_call.1} parent=1 // pred_check_branch
      %48 = sbr.rel (0) target = $region21
    $region20: #{tpu_custom_call.1} parent=1 // pred_region
      _
    $region21: #{tpu_custom_call.1} parent=1 // pred_fallthru
      _
    // Predicated region
    $region22: #{tpu_custom_call.1} parent=1 // pred_check
      _
    $region23: #{tpu_custom_call.1} parent=1 // pred_check_branch
      %50 = sbr.rel (0) target = $region25
    $region24: #{tpu_custom_call.1} parent=1 // pred_region
      _
    $region25: #{tpu_custom_call.1} parent=1 // pred_fallthru
      _
    // Predicated region
    $region26: #{tpu_custom_call.1} parent=1 // pred_check
      _
    $region27: #{tpu_custom_call.1} parent=1 // pred_check_branch
      %52 = sbr.rel (0) target = $region29
    $region28: #{tpu_custom_call.1} parent=1 // pred_region
      _
    $region29: #{tpu_custom_call.1} parent=1 // pred_fallthru
      _
    // Predicated region
    $region30: #{tpu_custom_call.1} parent=1 // pred_check
      _
    $region31: #{tpu_custom_call.1} parent=1 // pred_check_branch
      %54 = sbr.rel (0) target = $region33
    $region32: #{tpu_custom_call.1} parent=1 // pred_region
      _
    $region33: #{tpu_custom_call.1} parent=1 // pred_fallthru
      _
    // Predicated region
    $region34: #{tpu_custom_call.1} parent=1 // pred_check
      _
    $region35: #{tpu_custom_call.1} parent=1 // pred_check_branch
      %56 = sbr.rel (0) target = $region37
    $region36: #{tpu_custom_call.1} parent=1 // pred_region
      _
    $region37: #{tpu_custom_call.1} parent=1 // pred_fallthru
      _
    // Predicated region
    $region38: #{tpu_custom_call.1} parent=1 // pred_check
      _
    $region39: #{tpu_custom_call.1} parent=1 // pred_check_branch
      %58 = sbr.rel (0) target = $region41
    $region40: #{tpu_custom_call.1} parent=1 // pred_region
      _
    $region41: #{tpu_custom_call.1} parent=1 // pred_fallthru
      _
    // Predicated region
    $region42: #{tpu_custom_call.1} parent=1 // pred_check
      _
    $region43: #{tpu_custom_call.1} parent=1 // pred_check_branch
      %60 = sbr.rel (0) target = $region45
    $region44: #{tpu_custom_call.1} parent=1 // pred_region
      %61 = dma.done [#allocation7], 1024
    $region45: #{tpu_custom_call.1} parent=1 // pred_fallthru
      _
    // Predicated region
    $region46: #{tpu_custom_call.1} parent=1 // pred_check
      _
    $region47: #{tpu_custom_call.1} parent=1 // pred_check_branch
      %63 = sbr.rel (0) target = $region49
    $region48: #{tpu_custom_call.1} parent=1 // pred_region
      %64 = dma.done [#allocation9], 32768
    $region49: #{tpu_custom_call.1} parent=1 // pred_fallthru
      _
    %s67 = sshll.u32 1, 14
    %s68 = sxor.u32 4294967295, %s67
    %s70 = sld [smem:[#allocation0]]
    %s71 = sadd.s32 2, %s70
    %s73 = sshll.u32 7, 26
    %s74 = sxor.u32 4294967295, %s73
    %s75 = sand.u32 0, %s74
    %s76 = sshll.u32 %s71, 26
    %s77 = sor.u32 %s75, %s76
    %s78 = sshll.u32 [#allocation2], 4
    %s79 = int_to_ptr.vmem [resolvable:$true] %s78
    %82 = sst [smem:[#allocation11]] 256
    %s83 = scalar_lea.smem [#allocation11], 1
    %84 = sst [smem:[%s83]] 256
    %s85 = scalar_lea.smem [#allocation11], 2
    %86 = sst [smem:[%s85]] 2
    %s87 = scalar_lea.smem [#allocation11], 3
    %88 = sst [smem:[%s87]] 64
    %s89 = scalar_lea.smem [#allocation11], 4
    %90 = sst [smem:[%s89]] 128
    %s91 = scalar_lea.smem [#allocation11], 5
    %92 = sst [smem:[%s91]] 2
    %s93 = scalar_lea.smem [#allocation11], 6
    %94 = sst [smem:[%s93]] 128
    %s95 = scalar_lea.smem [#allocation11], 7
    %96 = sst [smem:[%s95]] 64
    %s97 = scalar_lea.smem [#allocation11], 8
    %98 = sst [smem:[%s97]] 4
    %100 = dma.general %s4, 8192, %s79, [#allocation4], [#allocation10], [#allocation11], %s77, 0
    %s101 = scalar_lea.sflag [#allocation4], 1
    // Predicated region
    $region50: #{tpu_custom_call.1} parent=1 // pred_check
      _
    $region51: #{tpu_custom_call.1} parent=1 // pred_check_branch
      %103 = sbr.rel target = $region53
    $region52: #{tpu_custom_call.1} parent=1 // pred_region
      %104 = sst [smem:[#allocation14]] [#allocation13]
      %105 = sst [smem:[#allocation15]] [#allocation12]
    $region53: #{tpu_custom_call.1} parent=1 // pred_fallthru
      _
    %107 = shalt.err (0)
    %s109 = sshll.u32 [#allocation3], 4
    %s110 = int_to_ptr.vmem [resolvable:$true] %s109
    %112 = dma.hbm_to_vmem [thread:$0]  %s7, 2048, %s110, %s101
    %v113 = vld [vmem:[#allocation6] sm:$0xff]
    %v114 = vld [vmem:[#allocation6 + $0x8] sm:$0xff]
    %v115 = vld [vmem:[#allocation6 + $0x10] sm:$0xff]
    %v116 = vld [vmem:[#allocation6 + $0x18] sm:$0xff]
    %v117 = vld [vmem:[#allocation6 + $0x20] sm:$0xff]
    %v118 = vld [vmem:[#allocation6 + $0x28] sm:$0xff]
    %v119 = vld [vmem:[#allocation6 + $0x30] sm:$0xff]
    %v120 = vld [vmem:[#allocation6 + $0x38] sm:$0xff]
    %v121 = vpack.c.bf16 %v113, %v113
    %v122 = vpack.c.bf16 %v114, %v114
    %v123 = vpack.c.bf16 %v115, %v115
    %v124 = vpack.c.bf16 %v116, %v116
    %v125 = vpack.c.bf16 %v117, %v117
    %v126 = vpack.c.bf16 %v118, %v118
    %v127 = vpack.c.bf16 %v119, %v119
    %v128 = vpack.c.bf16 %v120, %v120
    %v129 = vld [vmem:[#allocation8] sm:$0xff]
    %v130 = vld [vmem:[#allocation8 + $0x8] sm:$0xff]
    %v131 = vld [vmem:[#allocation8 + $0x10] sm:$0xff]
    %v132 = vld [vmem:[#allocation8 + $0x18] sm:$0xff]
    %v133 = vld [vmem:[#allocation8 + $0x20] sm:$0xff]
    %v134 = vld [vmem:[#allocation8 + $0x28] sm:$0xff]
    %v135 = vld [vmem:[#allocation8 + $0x30] sm:$0xff]
    %v136 = vld [vmem:[#allocation8 + $0x38] sm:$0xff]
    %v137 = vld [vmem:[#allocation8 + $0x40] sm:$0xff]
    %v138 = vld [vmem:[#allocation8 + $0x48] sm:$0xff]
    %v139 = vld [vmem:[#allocation8 + $0x50] sm:$0xff]
    %v140 = vld [vmem:[#allocation8 + $0x58] sm:$0xff]
    %v141 = vld [vmem:[#allocation8 + $0x60] sm:$0xff]
    %v142 = vld [vmem:[#allocation8 + $0x68] sm:$0xff]
    %v143 = vld [vmem:[#allocation8 + $0x70] sm:$0xff]
    %v144 = vld [vmem:[#allocation8 + $0x78] sm:$0xff]
    %v145 = vld [vmem:[#allocation8 + $0x80] sm:$0xff]
    %v146 = vld [vmem:[#allocation8 + $0x88] sm:$0xff]
    %v147 = vld [vmem:[#allocation8 + $0x90] sm:$0xff]
    %v148 = vld [vmem:[#allocation8 + $0x98] sm:$0xff]
    %v149 = vld [vmem:[#allocation8 + $0xa0] sm:$0xff]
    %v150 = vld [vmem:[#allocation8 + $0xa8] sm:$0xff]
    %v151 = vld [vmem:[#allocation8 + $0xb0] sm:$0xff]
    %v152 = vld [vmem:[#allocation8 + $0xb8] sm:$0xff]
    %v153 = vld [vmem:[#allocation8 + $0xc0] sm:$0xff]
    %v154 = vld [vmem:[#allocation8 + $0xc8] sm:$0xff]
    %v155 = vld [vmem:[#allocation8 + $0xd0] sm:$0xff]
    %v156 = vld [vmem:[#allocation8 + $0xd8] sm:$0xff]
    %v157 = vld [vmem:[#allocation8 + $0xe0] sm:$0xff]
    %v158 = vld [vmem:[#allocation8 + $0xe8] sm:$0xff]
    %v159 = vld [vmem:[#allocation8 + $0xf0] sm:$0xff]
    %v160 = vld [vmem:[#allocation8 + $0xf8] sm:$0xff]
    %v161 = vld [vmem:[#allocation8 + $0x100] sm:$0xff]
    %v162 = vld [vmem:[#allocation8 + $0x108] sm:$0xff]
    %v163 = vld [vmem:[#allocation8 + $0x110] sm:$0xff]
    %v164 = vld [vmem:[#allocation8 + $0x118] sm:$0xff]
    %v165 = vld [vmem:[#allocation8 + $0x120] sm:$0xff]
    %v166 = vld [vmem:[#allocation8 + $0x128] sm:$0xff]
    %v167 = vld [vmem:[#allocation8 + $0x130] sm:$0xff]
    %v168 = vld [vmem:[#allocation8 + $0x138] sm:$0xff]
    %v169 = vld [vmem:[#allocation8 + $0x140] sm:$0xff]
    %v170 = vld [vmem:[#allocation8 + $0x148] sm:$0xff]
    %v171 = vld [vmem:[#allocation8 + $0x150] sm:$0xff]
    %v172 = vld [vmem:[#allocation8 + $0x158] sm:$0xff]
    %v173 = vld [vmem:[#allocation8 + $0x160] sm:$0xff]
    %v174 = vld [vmem:[#allocation8 + $0x168] sm:$0xff]
    %v175 = vld [vmem:[#allocation8 + $0x170] sm:$0xff]
    %v176 = vld [vmem:[#allocation8 + $0x178] sm:$0xff]
    %v177 = vld [vmem:[#allocation8 + $0x180] sm:$0xff]
    %v178 = vld [vmem:[#allocation8 + $0x188] sm:$0xff]
    %v179 = vld [vmem:[#allocation8 + $0x190] sm:$0xff]
    %v180 = vld [vmem:[#allocation8 + $0x198] sm:$0xff]
    %v181 = vld [vmem:[#allocation8 + $0x1a0] sm:$0xff]
    %v182 = vld [vmem:[#allocation8 + $0x1a8] sm:$0xff]
    %v183 = vld [vmem:[#allocation8 + $0x1b0] sm:$0xff]
    %v184 = vld [vmem:[#allocation8 + $0x1b8] sm:$0xff]
    %v185 = vld [vmem:[#allocation8 + $0x1c0] sm:$0xff]
    %v186 = vld [vmem:[#allocation8 + $0x1c8] sm:$0xff]
    %v187 = vld [vmem:[#allocation8 + $0x1d0] sm:$0xff]
    %v188 = vld [vmem:[#allocation8 + $0x1d8] sm:$0xff]
    %v189 = vld [vmem:[#allocation8 + $0x1e0] sm:$0xff]
    %v190 = vld [vmem:[#allocation8 + $0x1e8] sm:$0xff]
    %v191 = vld [vmem:[#allocation8 + $0x1f0] sm:$0xff]
    %v192 = vld [vmem:[#allocation8 + $0x1f8] sm:$0xff]
    %v193 = vld [vmem:[#allocation8 + $0x200] sm:$0xff]
    %v194 = vld [vmem:[#allocation8 + $0x208] sm:$0xff]
    %v195 = vld [vmem:[#allocation8 + $0x210] sm:$0xff]
    %v196 = vld [vmem:[#allocation8 + $0x218] sm:$0xff]
    %v197 = vld [vmem:[#allocation8 + $0x220] sm:$0xff]
    %v198 = vld [vmem:[#allocation8 + $0x228] sm:$0xff]
    %v199 = vld [vmem:[#allocation8 + $0x230] sm:$0xff]
    %v200 = vld [vmem:[#allocation8 + $0x238] sm:$0xff]
    %v201 = vld [vmem:[#allocation8 + $0x240] sm:$0xff]
    %v202 = vld [vmem:[#allocation8 + $0x248] sm:$0xff]
    %v203 = vld [vmem:[#allocation8 + $0x250] sm:$0xff]
    %v204 = vld [vmem:[#allocation8 + $0x258] sm:$0xff]
    %v205 = vld [vmem:[#allocation8 + $0x260] sm:$0xff]
    %v206 = vld [vmem:[#allocation8 + $0x268] sm:$0xff]
    %v207 = vld [vmem:[#allocation8 + $0x270] sm:$0xff]
    %v208 = vld [vmem:[#allocation8 + $0x278] sm:$0xff]
    %v209 = vld [vmem:[#allocation8 + $0x280] sm:$0xff]
    %v210 = vld [vmem:[#allocation8 + $0x288] sm:$0xff]
    %v211 = vld [vmem:[#allocation8 + $0x290] sm:$0xff]
    %v212 = vld [vmem:[#allocation8 + $0x298] sm:$0xff]
    %v213 = vld [vmem:[#allocation8 + $0x2a0] sm:$0xff]
    %v214 = vld [vmem:[#allocation8 + $0x2a8] sm:$0xff]
    %v215 = vld [vmem:[#allocation8 + $0x2b0] sm:$0xff]
    %v216 = vld [vmem:[#allocation8 + $0x2b8] sm:$0xff]
    %v217 = vld [vmem:[#allocation8 + $0x2c0] sm:$0xff]
    %v218 = vld [vmem:[#allocation8 + $0x2c8] sm:$0xff]
    %v219 = vld [vmem:[#allocation8 + $0x2d0] sm:$0xff]
    %v220 = vld [vmem:[#allocation8 + $0x2d8] sm:$0xff]
    %v221 = vld [vmem:[#allocation8 + $0x2e0] sm:$0xff]
    %v222 = vld [vmem:[#allocation8 + $0x2e8] sm:$0xff]
    %v223 = vld [vmem:[#allocation8 + $0x2f0] sm:$0xff]
    %v224 = vld [vmem:[#allocation8 + $0x2f8] sm:$0xff]
    %v225 = vld [vmem:[#allocation8 + $0x300] sm:$0xff]
    %v226 = vld [vmem:[#allocation8 + $0x308] sm:$0xff]
    %v227 = vld [vmem:[#allocation8 + $0x310] sm:$0xff]
    %v228 = vld [vmem:[#allocation8 + $0x318] sm:$0xff]
    %v229 = vld [vmem:[#allocation8 + $0x320] sm:$0xff]
    %v230 = vld [vmem:[#allocation8 + $0x328] sm:$0xff]
    %v231 = vld [vmem:[#allocation8 + $0x330] sm:$0xff]
    %v232 = vld [vmem:[#allocation8 + $0x338] sm:$0xff]
    %v233 = vld [vmem:[#allocation8 + $0x340] sm:$0xff]
    %v234 = vld [vmem:[#allocation8 + $0x348] sm:$0xff]
    %v235 = vld [vmem:[#allocation8 + $0x350] sm:$0xff]
    %v236 = vld [vmem:[#allocation8 + $0x358] sm:$0xff]
    %v237 = vld [vmem:[#allocation8 + $0x360] sm:$0xff]
    %v238 = vld [vmem:[#allocation8 + $0x368] sm:$0xff]
    %v239 = vld [vmem:[#allocation8 + $0x370] sm:$0xff]
    %v240 = vld [vmem:[#allocation8 + $0x378] sm:$0xff]
    %v241 = vld [vmem:[#allocation8 + $0x380] sm:$0xff]
    %v242 = vld [vmem:[#allocation8 + $0x388] sm:$0xff]
    %v243 = vld [vmem:[#allocation8 + $0x390] sm:$0xff]
    %v244 = vld [vmem:[#allocation8 + $0x398] sm:$0xff]
    %v245 = vld [vmem:[#allocation8 + $0x3a0] sm:$0xff]
    %v246 = vld [vmem:[#allocation8 + $0x3a8] sm:$0xff]
    %v247 = vld [vmem:[#allocation8 + $0x3b0] sm:$0xff]
    %v248 = vld [vmem:[#allocation8 + $0x3b8] sm:$0xff]
    %v249 = vld [vmem:[#allocation8 + $0x3c0] sm:$0xff]
    %v250 = vld [vmem:[#allocation8 + $0x3c8] sm:$0xff]
    %v251 = vld [vmem:[#allocation8 + $0x3d0] sm:$0xff]
    %v252 = vld [vmem:[#allocation8 + $0x3d8] sm:$0xff]
    %v253 = vld [vmem:[#allocation8 + $0x3e0] sm:$0xff]
    %v254 = vld [vmem:[#allocation8 + $0x3e8] sm:$0xff]
    %v255 = vld [vmem:[#allocation8 + $0x3f0] sm:$0xff]
    %v256 = vld [vmem:[#allocation8 + $0x3f8] sm:$0xff]
    %v257 = vld [vmem:[#allocation8 + $0x400] sm:$0xff]
    %v258 = vld [vmem:[#allocation8 + $0x408] sm:$0xff]
    %v259 = vld [vmem:[#allocation8 + $0x410] sm:$0xff]
    %v260 = vld [vmem:[#allocation8 + $0x418] sm:$0xff]
    %v261 = vld [vmem:[#allocation8 + $0x420] sm:$0xff]
    %v262 = vld [vmem:[#allocation8 + $0x428] sm:$0xff]
    %v263 = vld [vmem:[#allocation8 + $0x430] sm:$0xff]
    %v264 = vld [vmem:[#allocation8 + $0x438] sm:$0xff]
    %v265 = vld [vmem:[#allocation8 + $0x440] sm:$0xff]
    %v266 = vld [vmem:[#allocation8 + $0x448] sm:$0xff]
    %v267 = vld [vmem:[#allocation8 + $0x450] sm:$0xff]
    %v268 = vld [vmem:[#allocation8 + $0x458] sm:$0xff]
    %v269 = vld [vmem:[#allocation8 + $0x460] sm:$0xff]
    %v270 = vld [vmem:[#allocation8 + $0x468] sm:$0xff]
    %v271 = vld [vmem:[#allocation8 + $0x470] sm:$0xff]
    %v272 = vld [vmem:[#allocation8 + $0x478] sm:$0xff]
    %v273 = vld [vmem:[#allocation8 + $0x480] sm:$0xff]
    %v274 = vld [vmem:[#allocation8 + $0x488] sm:$0xff]
    %v275 = vld [vmem:[#allocation8 + $0x490] sm:$0xff]
    %v276 = vld [vmem:[#allocation8 + $0x498] sm:$0xff]
    %v277 = vld [vmem:[#allocation8 + $0x4a0] sm:$0xff]
    %v278 = vld [vmem:[#allocation8 + $0x4a8] sm:$0xff]
    %v279 = vld [vmem:[#allocation8 + $0x4b0] sm:$0xff]
    %v280 = vld [vmem:[#allocation8 + $0x4b8] sm:$0xff]
    %v281 = vld [vmem:[#allocation8 + $0x4c0] sm:$0xff]
    %v282 = vld [vmem:[#allocation8 + $0x4c8] sm:$0xff]
    %v283 = vld [vmem:[#allocation8 + $0x4d0] sm:$0xff]
    %v284 = vld [vmem:[#allocation8 + $0x4d8] sm:$0xff]
    %v285 = vld [vmem:[#allocation8 + $0x4e0] sm:$0xff]
    %v286 = vld [vmem:[#allocation8 + $0x4e8] sm:$0xff]
    %v287 = vld [vmem:[#allocation8 + $0x4f0] sm:$0xff]
    %v288 = vld [vmem:[#allocation8 + $0x4f8] sm:$0xff]
    %v289 = vld [vmem:[#allocation8 + $0x500] sm:$0xff]
    %v290 = vld [vmem:[#allocation8 + $0x508] sm:$0xff]
    %v291 = vld [vmem:[#allocation8 + $0x510] sm:$0xff]
    %v292 = vld [vmem:[#allocation8 + $0x518] sm:$0xff]
    %v293 = vld [vmem:[#allocation8 + $0x520] sm:$0xff]
    %v294 = vld [vmem:[#allocation8 + $0x528] sm:$0xff]
    %v295 = vld [vmem:[#allocation8 + $0x530] sm:$0xff]
    %v296 = vld [vmem:[#allocation8 + $0x538] sm:$0xff]
    %v297 = vld [vmem:[#allocation8 + $0x540] sm:$0xff]
    %v298 = vld [vmem:[#allocation8 + $0x548] sm:$0xff]
    %v299 = vld [vmem:[#allocation8 + $0x550] sm:$0xff]
    %v300 = vld [vmem:[#allocation8 + $0x558] sm:$0xff]
    %v301 = vld [vmem:[#allocation8 + $0x560] sm:$0xff]
    %v302 = vld [vmem:[#allocation8 + $0x568] sm:$0xff]
    %v303 = vld [vmem:[#allocation8 + $0x570] sm:$0xff]
    %v304 = vld [vmem:[#allocation8 + $0x578] sm:$0xff]
    %v305 = vld [vmem:[#allocation8 + $0x580] sm:$0xff]
    %v306 = vld [vmem:[#allocation8 + $0x588] sm:$0xff]
    %v307 = vld [vmem:[#allocation8 + $0x590] sm:$0xff]
    %v308 = vld [vmem:[#allocation8 + $0x598] sm:$0xff]
    %v309 = vld [vmem:[#allocation8 + $0x5a0] sm:$0xff]
    %v310 = vld [vmem:[#allocation8 + $0x5a8] sm:$0xff]
    %v311 = vld [vmem:[#allocation8 + $0x5b0] sm:$0xff]
    %v312 = vld [vmem:[#allocation8 + $0x5b8] sm:$0xff]
    %v313 = vld [vmem:[#allocation8 + $0x5c0] sm:$0xff]
    %v314 = vld [vmem:[#allocation8 + $0x5c8] sm:$0xff]
    %v315 = vld [vmem:[#allocation8 + $0x5d0] sm:$0xff]
    %v316 = vld [vmem:[#allocation8 + $0x5d8] sm:$0xff]
    %v317 = vld [vmem:[#allocation8 + $0x5e0] sm:$0xff]
    %v318 = vld [vmem:[#allocation8 + $0x5e8] sm:$0xff]
    %v319 = vld [vmem:[#allocation8 + $0x5f0] sm:$0xff]
    %v320 = vld [vmem:[#allocation8 + $0x5f8] sm:$0xff]
    %v321 = vld [vmem:[#allocation8 + $0x600] sm:$0xff]
    %v322 = vld [vmem:[#allocation8 + $0x608] sm:$0xff]
    %v323 = vld [vmem:[#allocation8 + $0x610] sm:$0xff]
    %v324 = vld [vmem:[#allocation8 + $0x618] sm:$0xff]
    %v325 = vld [vmem:[#allocation8 + $0x620] sm:$0xff]
    %v326 = vld [vmem:[#allocation8 + $0x628] sm:$0xff]
    %v327 = vld [vmem:[#allocation8 + $0x630] sm:$0xff]
    %v328 = vld [vmem:[#allocation8 + $0x638] sm:$0xff]
    %v329 = vld [vmem:[#allocation8 + $0x640] sm:$0xff]
    %v330 = vld [vmem:[#allocation8 + $0x648] sm:$0xff]
    %v331 = vld [vmem:[#allocation8 + $0x650] sm:$0xff]
    %v332 = vld [vmem:[#allocation8 + $0x658] sm:$0xff]
    %v333 = vld [vmem:[#allocation8 + $0x660] sm:$0xff]
    %v334 = vld [vmem:[#allocation8 + $0x668] sm:$0xff]
    %v335 = vld [vmem:[#allocation8 + $0x670] sm:$0xff]
    %v336 = vld [vmem:[#allocation8 + $0x678] sm:$0xff]
    %v337 = vld [vmem:[#allocation8 + $0x680] sm:$0xff]
    %v338 = vld [vmem:[#allocation8 + $0x688] sm:$0xff]
    %v339 = vld [vmem:[#allocation8 + $0x690] sm:$0xff]
    %v340 = vld [vmem:[#allocation8 + $0x698] sm:$0xff]
    %v341 = vld [vmem:[#allocation8 + $0x6a0] sm:$0xff]
    %v342 = vld [vmem:[#allocation8 + $0x6a8] sm:$0xff]
    %v343 = vld [vmem:[#allocation8 + $0x6b0] sm:$0xff]
    %v344 = vld [vmem:[#allocation8 + $0x6b8] sm:$0xff]
    %v345 = vld [vmem:[#allocation8 + $0x6c0] sm:$0xff]
    %v346 = vld [vmem:[#allocation8 + $0x6c8] sm:$0xff]
    %v347 = vld [vmem:[#allocation8 + $0x6d0] sm:$0xff]
    %v348 = vld [vmem:[#allocation8 + $0x6d8] sm:$0xff]
    %v349 = vld [vmem:[#allocation8 + $0x6e0] sm:$0xff]
    %v350 = vld [vmem:[#allocation8 + $0x6e8] sm:$0xff]
    %v351 = vld [vmem:[#allocation8 + $0x6f0] sm:$0xff]
    %v352 = vld [vmem:[#allocation8 + $0x6f8] sm:$0xff]
    %v353 = vld [vmem:[#allocation8 + $0x700] sm:$0xff]
    %v354 = vld [vmem:[#allocation8 + $0x708] sm:$0xff]
    %v355 = vld [vmem:[#allocation8 + $0x710] sm:$0xff]
    %v356 = vld [vmem:[#allocation8 + $0x718] sm:$0xff]
    %v357 = vld [vmem:[#allocation8 + $0x720] sm:$0xff]
    %v358 = vld [vmem:[#allocation8 + $0x728] sm:$0xff]
    %v359 = vld [vmem:[#allocation8 + $0x730] sm:$0xff]
    %v360 = vld [vmem:[#allocation8 + $0x738] sm:$0xff]
    %v361 = vld [vmem:[#allocation8 + $0x740] sm:$0xff]
    %v362 = vld [vmem:[#allocation8 + $0x748] sm:$0xff]
    %v363 = vld [vmem:[#allocation8 + $0x750] sm:$0xff]
    %v364 = vld [vmem:[#allocation8 + $0x758] sm:$0xff]
    %v365 = vld [vmem:[#allocation8 + $0x760] sm:$0xff]
    %v366 = vld [vmem:[#allocation8 + $0x768] sm:$0xff]
    %v367 = vld [vmem:[#allocation8 + $0x770] sm:$0xff]
    %v368 = vld [vmem:[#allocation8 + $0x778] sm:$0xff]
    %v369 = vld [vmem:[#allocation8 + $0x780] sm:$0xff]
    %v370 = vld [vmem:[#allocation8 + $0x788] sm:$0xff]
    %v371 = vld [vmem:[#allocation8 + $0x790] sm:$0xff]
    %v372 = vld [vmem:[#allocation8 + $0x798] sm:$0xff]
    %v373 = vld [vmem:[#allocation8 + $0x7a0] sm:$0xff]
    %v374 = vld [vmem:[#allocation8 + $0x7a8] sm:$0xff]
    %v375 = vld [vmem:[#allocation8 + $0x7b0] sm:$0xff]
    %v376 = vld [vmem:[#allocation8 + $0x7b8] sm:$0xff]
    %v377 = vld [vmem:[#allocation8 + $0x7c0] sm:$0xff]
    %v378 = vld [vmem:[#allocation8 + $0x7c8] sm:$0xff]
    %v379 = vld [vmem:[#allocation8 + $0x7d0] sm:$0xff]
    %v380 = vld [vmem:[#allocation8 + $0x7d8] sm:$0xff]
    %v381 = vld [vmem:[#allocation8 + $0x7e0] sm:$0xff]
    %v382 = vld [vmem:[#allocation8 + $0x7e8] sm:$0xff]
    %v383 = vld [vmem:[#allocation8 + $0x7f0] sm:$0xff]
    %v384 = vld [vmem:[#allocation8 + $0x7f8] sm:$0xff]
    %v641 = vunpack.c.l.b16 %v129
    %v642 = vunpack.c.h.b16 %v129
    %v643 = vunpack.c.l.b16 %v130
    %v644 = vunpack.c.h.b16 %v130
    %v645 = vunpack.c.l.b16 %v131
    %v646 = vunpack.c.h.b16 %v131
    %v647 = vunpack.c.l.b16 %v132
    %v648 = vunpack.c.h.b16 %v132
    %v649 = vunpack.c.l.b16 %v133
    %v650 = vunpack.c.h.b16 %v133
    %v651 = vunpack.c.l.b16 %v134
    %v652 = vunpack.c.h.b16 %v134
    %v653 = vunpack.c.l.b16 %v135
    %v654 = vunpack.c.h.b16 %v135
    %v655 = vunpack.c.l.b16 %v136
    %v656 = vunpack.c.h.b16 %v136
    %v657 = vunpack.c.l.b16 %v137
    %v658 = vunpack.c.h.b16 %v137
    %v659 = vunpack.c.l.b16 %v138
    %v660 = vunpack.c.h.b16 %v138
    %v661 = vunpack.c.l.b16 %v139
    %v662 = vunpack.c.h.b16 %v139
    %v663 = vunpack.c.l.b16 %v140
    %v664 = vunpack.c.h.b16 %v140
    %v665 = vunpack.c.l.b16 %v141
    %v666 = vunpack.c.h.b16 %v141
    %v667 = vunpack.c.l.b16 %v142
    %v668 = vunpack.c.h.b16 %v142
    %v669 = vunpack.c.l.b16 %v143
    %v670 = vunpack.c.h.b16 %v143
    %v671 = vunpack.c.l.b16 %v144
    %v672 = vunpack.c.h.b16 %v144
    %v673 = vunpack.c.l.b16 %v145
    %v674 = vunpack.c.h.b16 %v145
    %v675 = vunpack.c.l.b16 %v146
    %v676 = vunpack.c.h.b16 %v146
    %v677 = vunpack.c.l.b16 %v147
    %v678 = vunpack.c.h.b16 %v147
    %v679 = vunpack.c.l.b16 %v148
    %v680 = vunpack.c.h.b16 %v148
    %v681 = vunpack.c.l.b16 %v149
    %v682 = vunpack.c.h.b16 %v149
    %v683 = vunpack.c.l.b16 %v150
    %v684 = vunpack.c.h.b16 %v150
    %v685 = vunpack.c.l.b16 %v151
    %v686 = vunpack.c.h.b16 %v151
    %v687 = vunpack.c.l.b16 %v152
    %v688 = vunpack.c.h.b16 %v152
    %v689 = vunpack.c.l.b16 %v153
    %v690 = vunpack.c.h.b16 %v153
    %v691 = vunpack.c.l.b16 %v154
    %v692 = vunpack.c.h.b16 %v154
    %v693 = vunpack.c.l.b16 %v155
    %v694 = vunpack.c.h.b16 %v155
    %v695 = vunpack.c.l.b16 %v156
    %v696 = vunpack.c.h.b16 %v156
    %v697 = vunpack.c.l.b16 %v157
    %v698 = vunpack.c.h.b16 %v157
    %v699 = vunpack.c.l.b16 %v158
    %v700 = vunpack.c.h.b16 %v158
    %v701 = vunpack.c.l.b16 %v159
    %v702 = vunpack.c.h.b16 %v159
    %v703 = vunpack.c.l.b16 %v160
    %v704 = vunpack.c.h.b16 %v160
    %v705 = vunpack.c.l.b16 %v161
    %v706 = vunpack.c.h.b16 %v161
    %v707 = vunpack.c.l.b16 %v162
    %v708 = vunpack.c.h.b16 %v162
    %v709 = vunpack.c.l.b16 %v163
    %v710 = vunpack.c.h.b16 %v163
    %v711 = vunpack.c.l.b16 %v164
    %v712 = vunpack.c.h.b16 %v164
    %v713 = vunpack.c.l.b16 %v165
    %v714 = vunpack.c.h.b16 %v165
    %v715 = vunpack.c.l.b16 %v166
    %v716 = vunpack.c.h.b16 %v166
    %v717 = vunpack.c.l.b16 %v167
    %v718 = vunpack.c.h.b16 %v167
    %v719 = vunpack.c.l.b16 %v168
    %v720 = vunpack.c.h.b16 %v168
    %v721 = vunpack.c.l.b16 %v169
    %v722 = vunpack.c.h.b16 %v169
    %v723 = vunpack.c.l.b16 %v170
    %v724 = vunpack.c.h.b16 %v170
    %v725 = vunpack.c.l.b16 %v171
    %v726 = vunpack.c.h.b16 %v171
    %v727 = vunpack.c.l.b16 %v172
    %v728 = vunpack.c.h.b16 %v172
    %v729 = vunpack.c.l.b16 %v173
    %v730 = vunpack.c.h.b16 %v173
    %v731 = vunpack.c.l.b16 %v174
    %v732 = vunpack.c.h.b16 %v174
    %v733 = vunpack.c.l.b16 %v175
    %v734 = vunpack.c.h.b16 %v175
    %v735 = vunpack.c.l.b16 %v176
    %v736 = vunpack.c.h.b16 %v176
    %v737 = vunpack.c.l.b16 %v177
    %v738 = vunpack.c.h.b16 %v177
    %v739 = vunpack.c.l.b16 %v178
    %v740 = vunpack.c.h.b16 %v178
    %v741 = vunpack.c.l.b16 %v179
    %v742 = vunpack.c.h.b16 %v179
    %v743 = vunpack.c.l.b16 %v180
    %v744 = vunpack.c.h.b16 %v180
    %v745 = vunpack.c.l.b16 %v181
    %v746 = vunpack.c.h.b16 %v181
    %v747 = vunpack.c.l.b16 %v182
    %v748 = vunpack.c.h.b16 %v182
    %v749 = vunpack.c.l.b16 %v183
    %v750 = vunpack.c.h.b16 %v183
    %v751 = vunpack.c.l.b16 %v184
    %v752 = vunpack.c.h.b16 %v184
    %v753 = vunpack.c.l.b16 %v185
    %v754 = vunpack.c.h.b16 %v185
    %v755 = vunpack.c.l.b16 %v186
    %v756 = vunpack.c.h.b16 %v186
    %v757 = vunpack.c.l.b16 %v187
    %v758 = vunpack.c.h.b16 %v187
    %v759 = vunpack.c.l.b16 %v188
    %v760 = vunpack.c.h.b16 %v188
    %v761 = vunpack.c.l.b16 %v189
    %v762 = vunpack.c.h.b16 %v189
    %v763 = vunpack.c.l.b16 %v190
    %v764 = vunpack.c.h.b16 %v190
    %v765 = vunpack.c.l.b16 %v191
    %v766 = vunpack.c.h.b16 %v191
    %v767 = vunpack.c.l.b16 %v192
    %v768 = vunpack.c.h.b16 %v192
    %v769 = vunpack.c.l.b16 %v193
    %v770 = vunpack.c.h.b16 %v193
    %v771 = vunpack.c.l.b16 %v194
    %v772 = vunpack.c.h.b16 %v194
    %v773 = vunpack.c.l.b16 %v195
    %v774 = vunpack.c.h.b16 %v195
    %v775 = vunpack.c.l.b16 %v196
    %v776 = vunpack.c.h.b16 %v196
    %v777 = vunpack.c.l.b16 %v197
    %v778 = vunpack.c.h.b16 %v197
    %v779 = vunpack.c.l.b16 %v198
    %v780 = vunpack.c.h.b16 %v198
    %v781 = vunpack.c.l.b16 %v199
    %v782 = vunpack.c.h.b16 %v199
    %v783 = vunpack.c.l.b16 %v200
    %v784 = vunpack.c.h.b16 %v200
    %v785 = vunpack.c.l.b16 %v201
    %v786 = vunpack.c.h.b16 %v201
    %v787 = vunpack.c.l.b16 %v202
    %v788 = vunpack.c.h.b16 %v202
    %v789 = vunpack.c.l.b16 %v203
    %v790 = vunpack.c.h.b16 %v203
    %v791 = vunpack.c.l.b16 %v204
    %v792 = vunpack.c.h.b16 %v204
    %v793 = vunpack.c.l.b16 %v205
    %v794 = vunpack.c.h.b16 %v205
    %v795 = vunpack.c.l.b16 %v206
    %v796 = vunpack.c.h.b16 %v206
    %v797 = vunpack.c.l.b16 %v207
    %v798 = vunpack.c.h.b16 %v207
    %v799 = vunpack.c.l.b16 %v208
    %v800 = vunpack.c.h.b16 %v208
    %v801 = vunpack.c.l.b16 %v209
    %v802 = vunpack.c.h.b16 %v209
    %v803 = vunpack.c.l.b16 %v210
    %v804 = vunpack.c.h.b16 %v210
    %v805 = vunpack.c.l.b16 %v211
    %v806 = vunpack.c.h.b16 %v211
    %v807 = vunpack.c.l.b16 %v212
    %v808 = vunpack.c.h.b16 %v212
    %v809 = vunpack.c.l.b16 %v213
    %v810 = vunpack.c.h.b16 %v213
    %v811 = vunpack.c.l.b16 %v214
    %v812 = vunpack.c.h.b16 %v214
    %v813 = vunpack.c.l.b16 %v215
    %v814 = vunpack.c.h.b16 %v215
    %v815 = vunpack.c.l.b16 %v216
    %v816 = vunpack.c.h.b16 %v216
    %v817 = vunpack.c.l.b16 %v217
    %v818 = vunpack.c.h.b16 %v217
    %v819 = vunpack.c.l.b16 %v218
    %v820 = vunpack.c.h.b16 %v218
    %v821 = vunpack.c.l.b16 %v219
    %v822 = vunpack.c.h.b16 %v219
    %v823 = vunpack.c.l.b16 %v220
    %v824 = vunpack.c.h.b16 %v220
    %v825 = vunpack.c.l.b16 %v221
    %v826 = vunpack.c.h.b16 %v221
    %v827 = vunpack.c.l.b16 %v222
    %v828 = vunpack.c.h.b16 %v222
    %v829 = vunpack.c.l.b16 %v223
    %v830 = vunpack.c.h.b16 %v223
    %v831 = vunpack.c.l.b16 %v224
    %v832 = vunpack.c.h.b16 %v224
    %v833 = vunpack.c.l.b16 %v225
    %v834 = vunpack.c.h.b16 %v225
    %v835 = vunpack.c.l.b16 %v226
    %v836 = vunpack.c.h.b16 %v226
    %v837 = vunpack.c.l.b16 %v227
    %v838 = vunpack.c.h.b16 %v227
    %v839 = vunpack.c.l.b16 %v228
    %v840 = vunpack.c.h.b16 %v228
    %v841 = vunpack.c.l.b16 %v229
    %v842 = vunpack.c.h.b16 %v229
    %v843 = vunpack.c.l.b16 %v230
    %v844 = vunpack.c.h.b16 %v230
    %v845 = vunpack.c.l.b16 %v231
    %v846 = vunpack.c.h.b16 %v231
    %v847 = vunpack.c.l.b16 %v232
    %v848 = vunpack.c.h.b16 %v232
    %v849 = vunpack.c.l.b16 %v233
    %v850 = vunpack.c.h.b16 %v233
    %v851 = vunpack.c.l.b16 %v234
    %v852 = vunpack.c.h.b16 %v234
    %v853 = vunpack.c.l.b16 %v235
    %v854 = vunpack.c.h.b16 %v235
    %v855 = vunpack.c.l.b16 %v236
    %v856 = vunpack.c.h.b16 %v236
    %v857 = vunpack.c.l.b16 %v237
    %v858 = vunpack.c.h.b16 %v237
    %v859 = vunpack.c.l.b16 %v238
    %v860 = vunpack.c.h.b16 %v238
    %v861 = vunpack.c.l.b16 %v239
    %v862 = vunpack.c.h.b16 %v239
    %v863 = vunpack.c.l.b16 %v240
    %v864 = vunpack.c.h.b16 %v240
    %v865 = vunpack.c.l.b16 %v241
    %v866 = vunpack.c.h.b16 %v241
    %v867 = vunpack.c.l.b16 %v242
    %v868 = vunpack.c.h.b16 %v242
    %v869 = vunpack.c.l.b16 %v243
    %v870 = vunpack.c.h.b16 %v243
    %v871 = vunpack.c.l.b16 %v244
    %v872 = vunpack.c.h.b16 %v244
    %v873 = vunpack.c.l.b16 %v245
    %v874 = vunpack.c.h.b16 %v245
    %v875 = vunpack.c.l.b16 %v246
    %v876 = vunpack.c.h.b16 %v246
    %v877 = vunpack.c.l.b16 %v247
    %v878 = vunpack.c.h.b16 %v247
    %v879 = vunpack.c.l.b16 %v248
    %v880 = vunpack.c.h.b16 %v248
    %v881 = vunpack.c.l.b16 %v249
    %v882 = vunpack.c.h.b16 %v249
    %v883 = vunpack.c.l.b16 %v250
    %v884 = vunpack.c.h.b16 %v250
    %v885 = vunpack.c.l.b16 %v251
    %v886 = vunpack.c.h.b16 %v251
    %v887 = vunpack.c.l.b16 %v252
    %v888 = vunpack.c.h.b16 %v252
    %v889 = vunpack.c.l.b16 %v253
    %v890 = vunpack.c.h.b16 %v253
    %v891 = vunpack.c.l.b16 %v254
    %v892 = vunpack.c.h.b16 %v254
    %v893 = vunpack.c.l.b16 %v255
    %v894 = vunpack.c.h.b16 %v255
    %v895 = vunpack.c.l.b16 %v256
    %v896 = vunpack.c.h.b16 %v256
    %v897 = vunpack.c.l.b16 %v257
    %v898 = vunpack.c.h.b16 %v257
    %v899 = vunpack.c.l.b16 %v258
    %v900 = vunpack.c.h.b16 %v258
    %v901 = vunpack.c.l.b16 %v259
    %v902 = vunpack.c.h.b16 %v259
    %v903 = vunpack.c.l.b16 %v260
    %v904 = vunpack.c.h.b16 %v260
    %v905 = vunpack.c.l.b16 %v261
    %v906 = vunpack.c.h.b16 %v261
    %v907 = vunpack.c.l.b16 %v262
    %v908 = vunpack.c.h.b16 %v262
    %v909 = vunpack.c.l.b16 %v263
    %v910 = vunpack.c.h.b16 %v263
    %v911 = vunpack.c.l.b16 %v264
    %v912 = vunpack.c.h.b16 %v264
    %v913 = vunpack.c.l.b16 %v265
    %v914 = vunpack.c.h.b16 %v265
    %v915 = vunpack.c.l.b16 %v266
    %v916 = vunpack.c.h.b16 %v266
    %v917 = vunpack.c.l.b16 %v267
    %v918 = vunpack.c.h.b16 %v267
    %v919 = vunpack.c.l.b16 %v268
    %v920 = vunpack.c.h.b16 %v268
    %v921 = vunpack.c.l.b16 %v269
    %v922 = vunpack.c.h.b16 %v269
    %v923 = vunpack.c.l.b16 %v270
    %v924 = vunpack.c.h.b16 %v270
    %v925 = vunpack.c.l.b16 %v271
    %v926 = vunpack.c.h.b16 %v271
    %v927 = vunpack.c.l.b16 %v272
    %v928 = vunpack.c.h.b16 %v272
    %v929 = vunpack.c.l.b16 %v273
    %v930 = vunpack.c.h.b16 %v273
    %v931 = vunpack.c.l.b16 %v274
    %v932 = vunpack.c.h.b16 %v274
    %v933 = vunpack.c.l.b16 %v275
    %v934 = vunpack.c.h.b16 %v275
    %v935 = vunpack.c.l.b16 %v276
    %v936 = vunpack.c.h.b16 %v276
    %v937 = vunpack.c.l.b16 %v277
    %v938 = vunpack.c.h.b16 %v277
    %v939 = vunpack.c.l.b16 %v278
    %v940 = vunpack.c.h.b16 %v278
    %v941 = vunpack.c.l.b16 %v279
    %v942 = vunpack.c.h.b16 %v279
    %v943 = vunpack.c.l.b16 %v280
    %v944 = vunpack.c.h.b16 %v280
    %v945 = vunpack.c.l.b16 %v281
    %v946 = vunpack.c.h.b16 %v281
    %v947 = vunpack.c.l.b16 %v282
    %v948 = vunpack.c.h.b16 %v282
    %v949 = vunpack.c.l.b16 %v283
    %v950 = vunpack.c.h.b16 %v283
    %v951 = vunpack.c.l.b16 %v284
    %v952 = vunpack.c.h.b16 %v284
    %v953 = vunpack.c.l.b16 %v285
    %v954 = vunpack.c.h.b16 %v285
    %v955 = vunpack.c.l.b16 %v286
    %v956 = vunpack.c.h.b16 %v286
    %v957 = vunpack.c.l.b16 %v287
    %v958 = vunpack.c.h.b16 %v287
    %v959 = vunpack.c.l.b16 %v288
    %v960 = vunpack.c.h.b16 %v288
    %v961 = vunpack.c.l.b16 %v289
    %v962 = vunpack.c.h.b16 %v289
    %v963 = vunpack.c.l.b16 %v290
    %v964 = vunpack.c.h.b16 %v290
    %v965 = vunpack.c.l.b16 %v291
    %v966 = vunpack.c.h.b16 %v291
    %v967 = vunpack.c.l.b16 %v292
    %v968 = vunpack.c.h.b16 %v292
    %v969 = vunpack.c.l.b16 %v293
    %v970 = vunpack.c.h.b16 %v293
    %v971 = vunpack.c.l.b16 %v294
    %v972 = vunpack.c.h.b16 %v294
    %v973 = vunpack.c.l.b16 %v295
    %v974 = vunpack.c.h.b16 %v295
    %v975 = vunpack.c.l.b16 %v296
    %v976 = vunpack.c.h.b16 %v296
    %v977 = vunpack.c.l.b16 %v297
    %v978 = vunpack.c.h.b16 %v297
    %v979 = vunpack.c.l.b16 %v298
    %v980 = vunpack.c.h.b16 %v298
    %v981 = vunpack.c.l.b16 %v299
    %v982 = vunpack.c.h.b16 %v299
    %v983 = vunpack.c.l.b16 %v300
    %v984 = vunpack.c.h.b16 %v300
    %v985 = vunpack.c.l.b16 %v301
    %v986 = vunpack.c.h.b16 %v301
    %v987 = vunpack.c.l.b16 %v302
    %v988 = vunpack.c.h.b16 %v302
    %v989 = vunpack.c.l.b16 %v303
    %v990 = vunpack.c.h.b16 %v303
    %v991 = vunpack.c.l.b16 %v304
    %v992 = vunpack.c.h.b16 %v304
    %v993 = vunpack.c.l.b16 %v305
    %v994 = vunpack.c.h.b16 %v305
    %v995 = vunpack.c.l.b16 %v306
    %v996 = vunpack.c.h.b16 %v306
    %v997 = vunpack.c.l.b16 %v307
    %v998 = vunpack.c.h.b16 %v307
    %v999 = vunpack.c.l.b16 %v308
    %v1000 = vunpack.c.h.b16 %v308
    %v1001 = vunpack.c.l.b16 %v309
    %v1002 = vunpack.c.h.b16 %v309
    %v1003 = vunpack.c.l.b16 %v310
    %v1004 = vunpack.c.h.b16 %v310
    %v1005 = vunpack.c.l.b16 %v311
    %v1006 = vunpack.c.h.b16 %v311
    %v1007 = vunpack.c.l.b16 %v312
    %v1008 = vunpack.c.h.b16 %v312
    %v1009 = vunpack.c.l.b16 %v313
    %v1010 = vunpack.c.h.b16 %v313
    %v1011 = vunpack.c.l.b16 %v314
    %v1012 = vunpack.c.h.b16 %v314
    %v1013 = vunpack.c.l.b16 %v315
    %v1014 = vunpack.c.h.b16 %v315
    %v1015 = vunpack.c.l.b16 %v316
    %v1016 = vunpack.c.h.b16 %v316
    %v1017 = vunpack.c.l.b16 %v317
    %v1018 = vunpack.c.h.b16 %v317
    %v1019 = vunpack.c.l.b16 %v318
    %v1020 = vunpack.c.h.b16 %v318
    %v1021 = vunpack.c.l.b16 %v319
    %v1022 = vunpack.c.h.b16 %v319
    %v1023 = vunpack.c.l.b16 %v320
    %v1024 = vunpack.c.h.b16 %v320
    %v1025 = vunpack.c.l.b16 %v321
    %v1026 = vunpack.c.h.b16 %v321
    %v1027 = vunpack.c.l.b16 %v322
    %v1028 = vunpack.c.h.b16 %v322
    %v1029 = vunpack.c.l.b16 %v323
    %v1030 = vunpack.c.h.b16 %v323
    %v1031 = vunpack.c.l.b16 %v324
    %v1032 = vunpack.c.h.b16 %v324
    %v1033 = vunpack.c.l.b16 %v325
    %v1034 = vunpack.c.h.b16 %v325
    %v1035 = vunpack.c.l.b16 %v326
    %v1036 = vunpack.c.h.b16 %v326
    %v1037 = vunpack.c.l.b16 %v327
    %v1038 = vunpack.c.h.b16 %v327
    %v1039 = vunpack.c.l.b16 %v328
    %v1040 = vunpack.c.h.b16 %v328
    %v1041 = vunpack.c.l.b16 %v329
    %v1042 = vunpack.c.h.b16 %v329
    %v1043 = vunpack.c.l.b16 %v330
    %v1044 = vunpack.c.h.b16 %v330
    %v1045 = vunpack.c.l.b16 %v331
    %v1046 = vunpack.c.h.b16 %v331
    %v1047 = vunpack.c.l.b16 %v332
    %v1048 = vunpack.c.h.b16 %v332
    %v1049 = vunpack.c.l.b16 %v333
    %v1050 = vunpack.c.h.b16 %v333
    %v1051 = vunpack.c.l.b16 %v334
    %v1052 = vunpack.c.h.b16 %v334
    %v1053 = vunpack.c.l.b16 %v335
    %v1054 = vunpack.c.h.b16 %v335
    %v1055 = vunpack.c.l.b16 %v336
    %v1056 = vunpack.c.h.b16 %v336
    %v1057 = vunpack.c.l.b16 %v337
    %v1058 = vunpack.c.h.b16 %v337
    %v1059 = vunpack.c.l.b16 %v338
    %v1060 = vunpack.c.h.b16 %v338
    %v1061 = vunpack.c.l.b16 %v339
    %v1062 = vunpack.c.h.b16 %v339
    %v1063 = vunpack.c.l.b16 %v340
    %v1064 = vunpack.c.h.b16 %v340
    %v1065 = vunpack.c.l.b16 %v341
    %v1066 = vunpack.c.h.b16 %v341
    %v1067 = vunpack.c.l.b16 %v342
    %v1068 = vunpack.c.h.b16 %v342
    %v1069 = vunpack.c.l.b16 %v343
    %v1070 = vunpack.c.h.b16 %v343
    %v1071 = vunpack.c.l.b16 %v344
    %v1072 = vunpack.c.h.b16 %v344
    %v1073 = vunpack.c.l.b16 %v345
    %v1074 = vunpack.c.h.b16 %v345
    %v1075 = vunpack.c.l.b16 %v346
    %v1076 = vunpack.c.h.b16 %v346
    %v1077 = vunpack.c.l.b16 %v347
    %v1078 = vunpack.c.h.b16 %v347
    %v1079 = vunpack.c.l.b16 %v348
    %v1080 = vunpack.c.h.b16 %v348
    %v1081 = vunpack.c.l.b16 %v349
    %v1082 = vunpack.c.h.b16 %v349
    %v1083 = vunpack.c.l.b16 %v350
    %v1084 = vunpack.c.h.b16 %v350
    %v1085 = vunpack.c.l.b16 %v351
    %v1086 = vunpack.c.h.b16 %v351
    %v1087 = vunpack.c.l.b16 %v352
    %v1088 = vunpack.c.h.b16 %v352
    %v1089 = vunpack.c.l.b16 %v353
    %v1090 = vunpack.c.h.b16 %v353
    %v1091 = vunpack.c.l.b16 %v354
    %v1092 = vunpack.c.h.b16 %v354
    %v1093 = vunpack.c.l.b16 %v355
    %v1094 = vunpack.c.h.b16 %v355
    %v1095 = vunpack.c.l.b16 %v356
    %v1096 = vunpack.c.h.b16 %v356
    %v1097 = vunpack.c.l.b16 %v357
    %v1098 = vunpack.c.h.b16 %v357
    %v1099 = vunpack.c.l.b16 %v358
    %v1100 = vunpack.c.h.b16 %v358
    %v1101 = vunpack.c.l.b16 %v359
    %v1102 = vunpack.c.h.b16 %v359
    %v1103 = vunpack.c.l.b16 %v360
    %v1104 = vunpack.c.h.b16 %v360
    %v1105 = vunpack.c.l.b16 %v361
    %v1106 = vunpack.c.h.b16 %v361
    %v1107 = vunpack.c.l.b16 %v362
    %v1108 = vunpack.c.h.b16 %v362
    %v1109 = vunpack.c.l.b16 %v363
    %v1110 = vunpack.c.h.b16 %v363
    %v1111 = vunpack.c.l.b16 %v364
    %v1112 = vunpack.c.h.b16 %v364
    %v1113 = vunpack.c.l.b16 %v365
    %v1114 = vunpack.c.h.b16 %v365
    %v1115 = vunpack.c.l.b16 %v366
    %v1116 = vunpack.c.h.b16 %v366
    %v1117 = vunpack.c.l.b16 %v367
    %v1118 = vunpack.c.h.b16 %v367
    %v1119 = vunpack.c.l.b16 %v368
    %v1120 = vunpack.c.h.b16 %v368
    %v1121 = vunpack.c.l.b16 %v369
    %v1122 = vunpack.c.h.b16 %v369
    %v1123 = vunpack.c.l.b16 %v370
    %v1124 = vunpack.c.h.b16 %v370
    %v1125 = vunpack.c.l.b16 %v371
    %v1126 = vunpack.c.h.b16 %v371
    %v1127 = vunpack.c.l.b16 %v372
    %v1128 = vunpack.c.h.b16 %v372
    %v1129 = vunpack.c.l.b16 %v373
    %v1130 = vunpack.c.h.b16 %v373
    %v1131 = vunpack.c.l.b16 %v374
    %v1132 = vunpack.c.h.b16 %v374
    %v1133 = vunpack.c.l.b16 %v375
    %v1134 = vunpack.c.h.b16 %v375
    %v1135 = vunpack.c.l.b16 %v376
    %v1136 = vunpack.c.h.b16 %v376
    %v1137 = vunpack.c.l.b16 %v377
    %v1138 = vunpack.c.h.b16 %v377
    %v1139 = vunpack.c.l.b16 %v378
    %v1140 = vunpack.c.h.b16 %v378
    %v1141 = vunpack.c.l.b16 %v379
    %v1142 = vunpack.c.h.b16 %v379
    %v1143 = vunpack.c.l.b16 %v380
    %v1144 = vunpack.c.h.b16 %v380
    %v1145 = vunpack.c.l.b16 %v381
    %v1146 = vunpack.c.h.b16 %v381
    %v1147 = vunpack.c.l.b16 %v382
    %v1148 = vunpack.c.h.b16 %v382
    %v1149 = vunpack.c.l.b16 %v383
    %v1150 = vunpack.c.h.b16 %v383
    %v1151 = vunpack.c.l.b16 %v384
    %v1152 = vunpack.c.h.b16 %v384
    %v1153 = vpack.c.b16 %v645, %v641
    %v1154 = vpack.c.b16 %v646, %v642
    %v1155 = vpack.c.b16 %v647, %v643
    %v1156 = vpack.c.b16 %v648, %v644
    %v1157 = vpack.c.b16 %v653, %v649
    %v1158 = vpack.c.b16 %v654, %v650
    %v1159 = vpack.c.b16 %v655, %v651
    %v1160 = vpack.c.b16 %v656, %v652
    %v1161 = vpack.c.b16 %v661, %v657
    %v1162 = vpack.c.b16 %v662, %v658
    %v1163 = vpack.c.b16 %v663, %v659
    %v1164 = vpack.c.b16 %v664, %v660
    %v1165 = vpack.c.b16 %v669, %v665
    %v1166 = vpack.c.b16 %v670, %v666
    %v1167 = vpack.c.b16 %v671, %v667
    %v1168 = vpack.c.b16 %v672, %v668
    %v1169 = vpack.c.b16 %v677, %v673
    %v1170 = vpack.c.b16 %v678, %v674
    %v1171 = vpack.c.b16 %v679, %v675
    %v1172 = vpack.c.b16 %v680, %v676
    %v1173 = vpack.c.b16 %v685, %v681
    %v1174 = vpack.c.b16 %v686, %v682
    %v1175 = vpack.c.b16 %v687, %v683
    %v1176 = vpack.c.b16 %v688, %v684
    %v1177 = vpack.c.b16 %v693, %v689
    %v1178 = vpack.c.b16 %v694, %v690
    %v1179 = vpack.c.b16 %v695, %v691
    %v1180 = vpack.c.b16 %v696, %v692
    %v1181 = vpack.c.b16 %v701, %v697
    %v1182 = vpack.c.b16 %v702, %v698
    %v1183 = vpack.c.b16 %v703, %v699
    %v1184 = vpack.c.b16 %v704, %v700
    %v1185 = vpack.c.b16 %v709, %v705
    %v1186 = vpack.c.b16 %v710, %v706
    %v1187 = vpack.c.b16 %v711, %v707
    %v1188 = vpack.c.b16 %v712, %v708
    %v1189 = vpack.c.b16 %v717, %v713
    %v1190 = vpack.c.b16 %v718, %v714
    %v1191 = vpack.c.b16 %v719, %v715
    %v1192 = vpack.c.b16 %v720, %v716
    %v1193 = vpack.c.b16 %v725, %v721
    %v1194 = vpack.c.b16 %v726, %v722
    %v1195 = vpack.c.b16 %v727, %v723
    %v1196 = vpack.c.b16 %v728, %v724
    %v1197 = vpack.c.b16 %v733, %v729
    %v1198 = vpack.c.b16 %v734, %v730
    %v1199 = vpack.c.b16 %v735, %v731
    %v1200 = vpack.c.b16 %v736, %v732
    %v1201 = vpack.c.b16 %v741, %v737
    %v1202 = vpack.c.b16 %v742, %v738
    %v1203 = vpack.c.b16 %v743, %v739
    %v1204 = vpack.c.b16 %v744, %v740
    %v1205 = vpack.c.b16 %v749, %v745
    %v1206 = vpack.c.b16 %v750, %v746
    %v1207 = vpack.c.b16 %v751, %v747
    %v1208 = vpack.c.b16 %v752, %v748
    %v1209 = vpack.c.b16 %v757, %v753
    %v1210 = vpack.c.b16 %v758, %v754
    %v1211 = vpack.c.b16 %v759, %v755
    %v1212 = vpack.c.b16 %v760, %v756
    %v1213 = vpack.c.b16 %v765, %v761
    %v1214 = vpack.c.b16 %v766, %v762
    %v1215 = vpack.c.b16 %v767, %v763
    %v1216 = vpack.c.b16 %v768, %v764
    %v1217 = vpack.c.b16 %v773, %v769
    %v1218 = vpack.c.b16 %v774, %v770
    %v1219 = vpack.c.b16 %v775, %v771
    %v1220 = vpack.c.b16 %v776, %v772
    %v1221 = vpack.c.b16 %v781, %v777
    %v1222 = vpack.c.b16 %v782, %v778
    %v1223 = vpack.c.b16 %v783, %v779
    %v1224 = vpack.c.b16 %v784, %v780
    %v1225 = vpack.c.b16 %v789, %v785
    %v1226 = vpack.c.b16 %v790, %v786
    %v1227 = vpack.c.b16 %v791, %v787
    %v1228 = vpack.c.b16 %v792, %v788
    %v1229 = vpack.c.b16 %v797, %v793
    %v1230 = vpack.c.b16 %v798, %v794
    %v1231 = vpack.c.b16 %v799, %v795
    %v1232 = vpack.c.b16 %v800, %v796
    %v1233 = vpack.c.b16 %v805, %v801
    %v1234 = vpack.c.b16 %v806, %v802
    %v1235 = vpack.c.b16 %v807, %v803
    %v1236 = vpack.c.b16 %v808, %v804
    %v1237 = vpack.c.b16 %v813, %v809
    %v1238 = vpack.c.b16 %v814, %v810
    %v1239 = vpack.c.b16 %v815, %v811
    %v1240 = vpack.c.b16 %v816, %v812
    %v1241 = vpack.c.b16 %v821, %v817
    %v1242 = vpack.c.b16 %v822, %v818
    %v1243 = vpack.c.b16 %v823, %v819
    %v1244 = vpack.c.b16 %v824, %v820
    %v1245 = vpack.c.b16 %v829, %v825
    %v1246 = vpack.c.b16 %v830, %v826
    %v1247 = vpack.c.b16 %v831, %v827
    %v1248 = vpack.c.b16 %v832, %v828
    %v1249 = vpack.c.b16 %v837, %v833
    %v1250 = vpack.c.b16 %v838, %v834
    %v1251 = vpack.c.b16 %v839, %v835
    %v1252 = vpack.c.b16 %v840, %v836
    %v1253 = vpack.c.b16 %v845, %v841
    %v1254 = vpack.c.b16 %v846, %v842
    %v1255 = vpack.c.b16 %v847, %v843
    %v1256 = vpack.c.b16 %v848, %v844
    %v1257 = vpack.c.b16 %v853, %v849
    %v1258 = vpack.c.b16 %v854, %v850
    %v1259 = vpack.c.b16 %v855, %v851
    %v1260 = vpack.c.b16 %v856, %v852
    %v1261 = vpack.c.b16 %v861, %v857
    %v1262 = vpack.c.b16 %v862, %v858
    %v1263 = vpack.c.b16 %v863, %v859
    %v1264 = vpack.c.b16 %v864, %v860
    %v1265 = vpack.c.b16 %v869, %v865
    %v1266 = vpack.c.b16 %v870, %v866
    %v1267 = vpack.c.b16 %v871, %v867
    %v1268 = vpack.c.b16 %v872, %v868
    %v1269 = vpack.c.b16 %v877, %v873
    %v1270 = vpack.c.b16 %v878, %v874
    %v1271 = vpack.c.b16 %v879, %v875
    %v1272 = vpack.c.b16 %v880, %v876
    %v1273 = vpack.c.b16 %v885, %v881
    %v1274 = vpack.c.b16 %v886, %v882
    %v1275 = vpack.c.b16 %v887, %v883
    %v1276 = vpack.c.b16 %v888, %v884
    %v1277 = vpack.c.b16 %v893, %v889
    %v1278 = vpack.c.b16 %v894, %v890
    %v1279 = vpack.c.b16 %v895, %v891
    %v1280 = vpack.c.b16 %v896, %v892
    %v1281 = vpack.c.b16 %v901, %v897
    %v1282 = vpack.c.b16 %v902, %v898
    %v1283 = vpack.c.b16 %v903, %v899
    %v1284 = vpack.c.b16 %v904, %v900
    %v1285 = vpack.c.b16 %v909, %v905
    %v1286 = vpack.c.b16 %v910, %v906
    %v1287 = vpack.c.b16 %v911, %v907
    %v1288 = vpack.c.b16 %v912, %v908
    %v1289 = vpack.c.b16 %v917, %v913
    %v1290 = vpack.c.b16 %v918, %v914
    %v1291 = vpack.c.b16 %v919, %v915
    %v1292 = vpack.c.b16 %v920, %v916
    %v1293 = vpack.c.b16 %v925, %v921
    %v1294 = vpack.c.b16 %v926, %v922
    %v1295 = vpack.c.b16 %v927, %v923
    %v1296 = vpack.c.b16 %v928, %v924
    %v1297 = vpack.c.b16 %v933, %v929
    %v1298 = vpack.c.b16 %v934, %v930
    %v1299 = vpack.c.b16 %v935, %v931
    %v1300 = vpack.c.b16 %v936, %v932
    %v1301 = vpack.c.b16 %v941, %v937
    %v1302 = vpack.c.b16 %v942, %v938
    %v1303 = vpack.c.b16 %v943, %v939
    %v1304 = vpack.c.b16 %v944, %v940
    %v1305 = vpack.c.b16 %v949, %v945
    %v1306 = vpack.c.b16 %v950, %v946
    %v1307 = vpack.c.b16 %v951, %v947
    %v1308 = vpack.c.b16 %v952, %v948
    %v1309 = vpack.c.b16 %v957, %v953
    %v1310 = vpack.c.b16 %v958, %v954
    %v1311 = vpack.c.b16 %v959, %v955
    %v1312 = vpack.c.b16 %v960, %v956
    %v1313 = vpack.c.b16 %v965, %v961
    %v1314 = vpack.c.b16 %v966, %v962
    %v1315 = vpack.c.b16 %v967, %v963
    %v1316 = vpack.c.b16 %v968, %v964
    %v1317 = vpack.c.b16 %v973, %v969
    %v1318 = vpack.c.b16 %v974, %v970
    %v1319 = vpack.c.b16 %v975, %v971
    %v1320 = vpack.c.b16 %v976, %v972
    %v1321 = vpack.c.b16 %v981, %v977
    %v1322 = vpack.c.b16 %v982, %v978
    %v1323 = vpack.c.b16 %v983, %v979
    %v1324 = vpack.c.b16 %v984, %v980
    %v1325 = vpack.c.b16 %v989, %v985
    %v1326 = vpack.c.b16 %v990, %v986
    %v1327 = vpack.c.b16 %v991, %v987
    %v1328 = vpack.c.b16 %v992, %v988
    %v1329 = vpack.c.b16 %v997, %v993
    %v1330 = vpack.c.b16 %v998, %v994
    %v1331 = vpack.c.b16 %v999, %v995
    %v1332 = vpack.c.b16 %v1000, %v996
    %v1333 = vpack.c.b16 %v1005, %v1001
    %v1334 = vpack.c.b16 %v1006, %v1002
    %v1335 = vpack.c.b16 %v1007, %v1003
    %v1336 = vpack.c.b16 %v1008, %v1004
    %v1337 = vpack.c.b16 %v1013, %v1009
    %v1338 = vpack.c.b16 %v1014, %v1010
    %v1339 = vpack.c.b16 %v1015, %v1011
    %v1340 = vpack.c.b16 %v1016, %v1012
    %v1341 = vpack.c.b16 %v1021, %v1017
    %v1342 = vpack.c.b16 %v1022, %v1018
    %v1343 = vpack.c.b16 %v1023, %v1019
    %v1344 = vpack.c.b16 %v1024, %v1020
    %v1345 = vpack.c.b16 %v1029, %v1025
    %v1346 = vpack.c.b16 %v1030, %v1026
    %v1347 = vpack.c.b16 %v1031, %v1027
    %v1348 = vpack.c.b16 %v1032, %v1028
    %v1349 = vpack.c.b16 %v1037, %v1033
    %v1350 = vpack.c.b16 %v1038, %v1034
    %v1351 = vpack.c.b16 %v1039, %v1035
    %v1352 = vpack.c.b16 %v1040, %v1036
    %v1353 = vpack.c.b16 %v1045, %v1041
    %v1354 = vpack.c.b16 %v1046, %v1042
    %v1355 = vpack.c.b16 %v1047, %v1043
    %v1356 = vpack.c.b16 %v1048, %v1044
    %v1357 = vpack.c.b16 %v1053, %v1049
    %v1358 = vpack.c.b16 %v1054, %v1050
    %v1359 = vpack.c.b16 %v1055, %v1051
    %v1360 = vpack.c.b16 %v1056, %v1052
    %v1361 = vpack.c.b16 %v1061, %v1057
    %v1362 = vpack.c.b16 %v1062, %v1058
    %v1363 = vpack.c.b16 %v1063, %v1059
    %v1364 = vpack.c.b16 %v1064, %v1060
    %v1365 = vpack.c.b16 %v1069, %v1065
    %v1366 = vpack.c.b16 %v1070, %v1066
    %v1367 = vpack.c.b16 %v1071, %v1067
    %v1368 = vpack.c.b16 %v1072, %v1068
    %v1369 = vpack.c.b16 %v1077, %v1073
    %v1370 = vpack.c.b16 %v1078, %v1074
    %v1371 = vpack.c.b16 %v1079, %v1075
    %v1372 = vpack.c.b16 %v1080, %v1076
    %v1373 = vpack.c.b16 %v1085, %v1081
    %v1374 = vpack.c.b16 %v1086, %v1082
    %v1375 = vpack.c.b16 %v1087, %v1083
    %v1376 = vpack.c.b16 %v1088, %v1084
    %v1377 = vpack.c.b16 %v1093, %v1089
    %v1378 = vpack.c.b16 %v1094, %v1090
    %v1379 = vpack.c.b16 %v1095, %v1091
    %v1380 = vpack.c.b16 %v1096, %v1092
    %v1381 = vpack.c.b16 %v1101, %v1097
    %v1382 = vpack.c.b16 %v1102, %v1098
    %v1383 = vpack.c.b16 %v1103, %v1099
    %v1384 = vpack.c.b16 %v1104, %v1100
    %v1385 = vpack.c.b16 %v1109, %v1105
    %v1386 = vpack.c.b16 %v1110, %v1106
    %v1387 = vpack.c.b16 %v1111, %v1107
    %v1388 = vpack.c.b16 %v1112, %v1108
    %v1389 = vpack.c.b16 %v1117, %v1113
    %v1390 = vpack.c.b16 %v1118, %v1114
    %v1391 = vpack.c.b16 %v1119, %v1115
    %v1392 = vpack.c.b16 %v1120, %v1116
    %v1393 = vpack.c.b16 %v1125, %v1121
    %v1394 = vpack.c.b16 %v1126, %v1122
    %v1395 = vpack.c.b16 %v1127, %v1123
    %v1396 = vpack.c.b16 %v1128, %v1124
    %v1397 = vpack.c.b16 %v1133, %v1129
    %v1398 = vpack.c.b16 %v1134, %v1130
    %v1399 = vpack.c.b16 %v1135, %v1131
    %v1400 = vpack.c.b16 %v1136, %v1132
    %v1401 = vpack.c.b16 %v1141, %v1137
    %v1402 = vpack.c.b16 %v1142, %v1138
    %v1403 = vpack.c.b16 %v1143, %v1139
    %v1404 = vpack.c.b16 %v1144, %v1140
    %v1405 = vpack.c.b16 %v1149, %v1145
    %v1406 = vpack.c.b16 %v1150, %v1146
    %v1407 = vpack.c.b16 %v1151, %v1147
    %v1408 = vpack.c.b16 %v1152, %v1148
    %1665 = vmatprep.subr.bf16.mxu0 %v1154
    %1666 = vmatpush1.bf16.msra.mxu0 %v1153
    %1667 = vmatprep.subr.bf16.mxu0 %v1158
    %1668 = vmatpush1.bf16.msra.mxu0 %v1157
    %1669 = vmatprep.subr.bf16.mxu0 %v1162
    %1670 = vmatpush1.bf16.msra.mxu0 %v1161
    %1671 = vmatprep.subr.bf16.mxu0 %v1166
    %1672 = vmatpush1.bf16.msra.mxu0 %v1165
    %1673 = vmatprep.subr.bf16.mxu0 %v1170
    %1674 = vmatpush1.bf16.msra.mxu0 %v1169
    %1675 = vmatprep.subr.bf16.mxu0 %v1174
    %1676 = vmatpush1.bf16.msra.mxu0 %v1173
    %1677 = vmatprep.subr.bf16.mxu0 %v1178
    %1678 = vmatpush1.bf16.msra.mxu0 %v1177
    %1679 = vmatprep.subr.bf16.mxu0 %v1182
    %1680 = vmatpush1.bf16.msra.mxu0 %v1181
    %1681 = vmatprep.subr.bf16.mxu0 %v1186
    %1682 = vmatpush1.bf16.msra.mxu0 %v1185
    %1683 = vmatprep.subr.bf16.mxu0 %v1190
    %1684 = vmatpush1.bf16.msra.mxu0 %v1189
    %1685 = vmatprep.subr.bf16.mxu0 %v1194
    %1686 = vmatpush1.bf16.msra.mxu0 %v1193
    %1687 = vmatprep.subr.bf16.mxu0 %v1198
    %1688 = vmatpush1.bf16.msra.mxu0 %v1197
    %1689 = vmatprep.subr.bf16.mxu0 %v1202
    %1690 = vmatpush1.bf16.msra.mxu0 %v1201
    %1691 = vmatprep.subr.bf16.mxu0 %v1206
    %1692 = vmatpush1.bf16.msra.mxu0 %v1205
    %1693 = vmatprep.subr.bf16.mxu0 %v1210
    %1694 = vmatpush1.bf16.msra.mxu0 %v1209
    %1695 = vmatprep.subr.bf16.mxu0 %v1214
    %1696 = vmatpush1.bf16.msra.mxu0 %v1213
    %1697 = vmatprep.mubr.bf16.mxu0 %v122
    %1698 = vmatmul.mubr.bf16.gmra.mrb[0].mxu0 %v121
    %v1699 = vpop.f32.mrb[0].mxu0
    %v1700 = vadd.f32 0.0, %v1699
    %v1701 = vpop.f32.mrb[0].mxu0
    %v1702 = vadd.f32 0.0, %v1701
    %v1703 = vpop.f32.mrb[0].mxu0
    %v1704 = vpop.f32.mrb[0].mxu0
    %1705 = vdwg.mxu0
    %1706 = vmatprep.subr.bf16.mxu0 %v1218
    %1707 = vmatpush1.bf16.msra.mxu0 %v1217
    %1708 = vmatprep.subr.bf16.mxu0 %v1222
    %1709 = vmatpush1.bf16.msra.mxu0 %v1221
    %1710 = vmatprep.subr.bf16.mxu0 %v1226
    %1711 = vmatpush1.bf16.msra.mxu0 %v1225
    %1712 = vmatprep.subr.bf16.mxu0 %v1230
    %1713 = vmatpush1.bf16.msra.mxu0 %v1229
    %1714 = vmatprep.subr.bf16.mxu0 %v1234
    %1715 = vmatpush1.bf16.msra.mxu0 %v1233
    %1716 = vmatprep.subr.bf16.mxu0 %v1238
    %1717 = vmatpush1.bf16.msra.mxu0 %v1237
    %1718 = vmatprep.subr.bf16.mxu0 %v1242
    %1719 = vmatpush1.bf16.msra.mxu0 %v1241
    %1720 = vmatprep.subr.bf16.mxu0 %v1246
    %1721 = vmatpush1.bf16.msra.mxu0 %v1245
    %1722 = vmatprep.subr.bf16.mxu0 %v1250
    %1723 = vmatpush1.bf16.msra.mxu0 %v1249
    %1724 = vmatprep.subr.bf16.mxu0 %v1254
    %1725 = vmatpush1.bf16.msra.mxu0 %v1253
    %1726 = vmatprep.subr.bf16.mxu0 %v1258
    %1727 = vmatpush1.bf16.msra.mxu0 %v1257
    %1728 = vmatprep.subr.bf16.mxu0 %v1262
    %1729 = vmatpush1.bf16.msra.mxu0 %v1261
    %1730 = vmatprep.subr.bf16.mxu0 %v1266
    %1731 = vmatpush1.bf16.msra.mxu0 %v1265
    %1732 = vmatprep.subr.bf16.mxu0 %v1270
    %1733 = vmatpush1.bf16.msra.mxu0 %v1269
    %1734 = vmatprep.subr.bf16.mxu0 %v1274
    %1735 = vmatpush1.bf16.msra.mxu0 %v1273
    %1736 = vmatprep.subr.bf16.mxu0 %v1278
    %1737 = vmatpush1.bf16.msra.mxu0 %v1277
    %1738 = vmatprep.mubr.bf16.mxu0 %v124
    %1739 = vmatmul.mubr.bf16.gmra.mrb[0].mxu0 %v123
    %v1740 = vpop.f32.mrb[0].mxu0
    %v1741 = vadd.f32 %v1700, %v1740
    %v1742 = vpop.f32.mrb[0].mxu0
    %v1743 = vadd.f32 %v1702, %v1742
    %v1744 = vpop.f32.mrb[0].mxu0
    %v1745 = vpop.f32.mrb[0].mxu0
    %1746 = vdwg.mxu0
    %1747 = vmatprep.subr.bf16.mxu0 %v1282
    %1748 = vmatpush1.bf16.msra.mxu0 %v1281
    %1749 = vmatprep.subr.bf16.mxu0 %v1286
    %1750 = vmatpush1.bf16.msra.mxu0 %v1285
    %1751 = vmatprep.subr.bf16.mxu0 %v1290
    %1752 = vmatpush1.bf16.msra.mxu0 %v1289
    %1753 = vmatprep.subr.bf16.mxu0 %v1294
    %1754 = vmatpush1.bf16.msra.mxu0 %v1293
    %1755 = vmatprep.subr.bf16.mxu0 %v1298
    %1756 = vmatpush1.bf16.msra.mxu0 %v1297
    %1757 = vmatprep.subr.bf16.mxu0 %v1302
    %1758 = vmatpush1.bf16.msra.mxu0 %v1301
    %1759 = vmatprep.subr.bf16.mxu0 %v1306
    %1760 = vmatpush1.bf16.msra.mxu0 %v1305
    %1761 = vmatprep.subr.bf16.mxu0 %v1310
    %1762 = vmatpush1.bf16.msra.mxu0 %v1309
    %1763 = vmatprep.subr.bf16.mxu0 %v1314
    %1764 = vmatpush1.bf16.msra.mxu0 %v1313
    %1765 = vmatprep.subr.bf16.mxu0 %v1318
    %1766 = vmatpush1.bf16.msra.mxu0 %v1317
    %1767 = vmatprep.subr.bf16.mxu0 %v1322
    %1768 = vmatpush1.bf16.msra.mxu0 %v1321
    %1769 = vmatprep.subr.bf16.mxu0 %v1326
    %1770 = vmatpush1.bf16.msra.mxu0 %v1325
    %1771 = vmatprep.subr.bf16.mxu0 %v1330
    %1772 = vmatpush1.bf16.msra.mxu0 %v1329
    %1773 = vmatprep.subr.bf16.mxu0 %v1334
    %1774 = vmatpush1.bf16.msra.mxu0 %v1333
    %1775 = vmatprep.subr.bf16.mxu0 %v1338
    %1776 = vmatpush1.bf16.msra.mxu0 %v1337
    %1777 = vmatprep.subr.bf16.mxu0 %v1342
    %1778 = vmatpush1.bf16.msra.mxu0 %v1341
    %1779 = vmatprep.mubr.bf16.mxu0 %v126
    %1780 = vmatmul.mubr.bf16.gmra.mrb[0].mxu0 %v125
    %v1781 = vpop.f32.mrb[0].mxu0
    %v1782 = vadd.f32 %v1741, %v1781
    %v1783 = vpop.f32.mrb[0].mxu0
    %v1784 = vadd.f32 %v1743, %v1783
    %v1785 = vpop.f32.mrb[0].mxu0
    %v1786 = vpop.f32.mrb[0].mxu0
    %1787 = vdwg.mxu0
    %1788 = vmatprep.subr.bf16.mxu0 %v1346
    %1789 = vmatpush1.bf16.msra.mxu0 %v1345
    %1790 = vmatprep.subr.bf16.mxu0 %v1350
    %1791 = vmatpush1.bf16.msra.mxu0 %v1349
    %1792 = vmatprep.subr.bf16.mxu0 %v1354
    %1793 = vmatpush1.bf16.msra.mxu0 %v1353
    %1794 = vmatprep.subr.bf16.mxu0 %v1358
    %1795 = vmatpush1.bf16.msra.mxu0 %v1357
    %1796 = vmatprep.subr.bf16.mxu0 %v1362
    %1797 = vmatpush1.bf16.msra.mxu0 %v1361
    %1798 = vmatprep.subr.bf16.mxu0 %v1366
    %1799 = vmatpush1.bf16.msra.mxu0 %v1365
    %1800 = vmatprep.subr.bf16.mxu0 %v1370
    %1801 = vmatpush1.bf16.msra.mxu0 %v1369
    %1802 = vmatprep.subr.bf16.mxu0 %v1374
    %1803 = vmatpush1.bf16.msra.mxu0 %v1373
    %1804 = vmatprep.subr.bf16.mxu0 %v1378
    %1805 = vmatpush1.bf16.msra.mxu0 %v1377
    %1806 = vmatprep.subr.bf16.mxu0 %v1382
    %1807 = vmatpush1.bf16.msra.mxu0 %v1381
    %1808 = vmatprep.subr.bf16.mxu0 %v1386
    %1809 = vmatpush1.bf16.msra.mxu0 %v1385
    %1810 = vmatprep.subr.bf16.mxu0 %v1390
    %1811 = vmatpush1.bf16.msra.mxu0 %v1389
    %1812 = vmatprep.subr.bf16.mxu0 %v1394
    %1813 = vmatpush1.bf16.msra.mxu0 %v1393
    %1814 = vmatprep.subr.bf16.mxu0 %v1398
    %1815 = vmatpush1.bf16.msra.mxu0 %v1397
    %1816 = vmatprep.subr.bf16.mxu0 %v1402
    %1817 = vmatpush1.bf16.msra.mxu0 %v1401
    %1818 = vmatprep.subr.bf16.mxu0 %v1406
    %1819 = vmatpush1.bf16.msra.mxu0 %v1405
    %1820 = vmatprep.mubr.bf16.mxu0 %v128
    %1821 = vmatmul.mubr.bf16.gmra.mrb[0].mxu0 %v127
    %v1822 = vpop.f32.mrb[0].mxu0
    %v1823 = vadd.f32 %v1782, %v1822
    %v1824 = vpop.f32.mrb[0].mxu0
    %v1825 = vadd.f32 %v1784, %v1824
    %v1826 = vpop.f32.mrb[0].mxu0
    %v1827 = vpop.f32.mrb[0].mxu0
    %1828 = vdwg.mxu0
    %1829 = vmatprep.subr.bf16.mxu0 %v1156
    %1830 = vmatpush1.bf16.msra.mxu0 %v1155
    %1831 = vmatprep.subr.bf16.mxu0 %v1160
    %1832 = vmatpush1.bf16.msra.mxu0 %v1159
    %1833 = vmatprep.subr.bf16.mxu0 %v1164
    %1834 = vmatpush1.bf16.msra.mxu0 %v1163
    %1835 = vmatprep.subr.bf16.mxu0 %v1168
    %1836 = vmatpush1.bf16.msra.mxu0 %v1167
    %1837 = vmatprep.subr.bf16.mxu0 %v1172
    %1838 = vmatpush1.bf16.msra.mxu0 %v1171
    %1839 = vmatprep.subr.bf16.mxu0 %v1176
    %1840 = vmatpush1.bf16.msra.mxu0 %v1175
    %1841 = vmatprep.subr.bf16.mxu0 %v1180
    %1842 = vmatpush1.bf16.msra.mxu0 %v1179
    %1843 = vmatprep.subr.bf16.mxu0 %v1184
    %1844 = vmatpush1.bf16.msra.mxu0 %v1183
    %1845 = vmatprep.subr.bf16.mxu0 %v1188
    %1846 = vmatpush1.bf16.msra.mxu0 %v1187
    %1847 = vmatprep.subr.bf16.mxu0 %v1192
    %1848 = vmatpush1.bf16.msra.mxu0 %v1191
    %1849 = vmatprep.subr.bf16.mxu0 %v1196
    %1850 = vmatpush1.bf16.msra.mxu0 %v1195
    %1851 = vmatprep.subr.bf16.mxu0 %v1200
    %1852 = vmatpush1.bf16.msra.mxu0 %v1199
    %1853 = vmatprep.subr.bf16.mxu0 %v1204
    %1854 = vmatpush1.bf16.msra.mxu0 %v1203
    %1855 = vmatprep.subr.bf16.mxu0 %v1208
    %1856 = vmatpush1.bf16.msra.mxu0 %v1207
    %1857 = vmatprep.subr.bf16.mxu0 %v1212
    %1858 = vmatpush1.bf16.msra.mxu0 %v1211
    %1859 = vmatprep.subr.bf16.mxu0 %v1216
    %1860 = vmatpush1.bf16.msra.mxu0 %v1215
    %1861 = vmatprep.mubr.bf16.mxu0 %v122
    %1862 = vmatmul.mubr.bf16.gmra.mrb[0].mxu0 %v121
    %v1863 = vpop.f32.mrb[0].mxu0
    %v1864 = vadd.f32 0.0, %v1863
    %v1865 = vpop.f32.mrb[0].mxu0
    %v1866 = vadd.f32 0.0, %v1865
    %v1867 = vpop.f32.mrb[0].mxu0
    %v1868 = vpop.f32.mrb[0].mxu0
    %1869 = vdwg.mxu0
    %1870 = vmatprep.subr.bf16.mxu0 %v1220
    %1871 = vmatpush1.bf16.msra.mxu0 %v1219
    %1872 = vmatprep.subr.bf16.mxu0 %v1224
    %1873 = vmatpush1.bf16.msra.mxu0 %v1223
    %1874 = vmatprep.subr.bf16.mxu0 %v1228
    %1875 = vmatpush1.bf16.msra.mxu0 %v1227
    %1876 = vmatprep.subr.bf16.mxu0 %v1232
    %1877 = vmatpush1.bf16.msra.mxu0 %v1231
    %1878 = vmatprep.subr.bf16.mxu0 %v1236
    %1879 = vmatpush1.bf16.msra.mxu0 %v1235
    %1880 = vmatprep.subr.bf16.mxu0 %v1240
    %1881 = vmatpush1.bf16.msra.mxu0 %v1239
    %1882 = vmatprep.subr.bf16.mxu0 %v1244
    %1883 = vmatpush1.bf16.msra.mxu0 %v1243
    %1884 = vmatprep.subr.bf16.mxu0 %v1248
    %1885 = vmatpush1.bf16.msra.mxu0 %v1247
    %1886 = vmatprep.subr.bf16.mxu0 %v1252
    %1887 = vmatpush1.bf16.msra.mxu0 %v1251
    %1888 = vmatprep.subr.bf16.mxu0 %v1256
    %1889 = vmatpush1.bf16.msra.mxu0 %v1255
    %1890 = vmatprep.subr.bf16.mxu0 %v1260
    %1891 = vmatpush1.bf16.msra.mxu0 %v1259
    %1892 = vmatprep.subr.bf16.mxu0 %v1264
    %1893 = vmatpush1.bf16.msra.mxu0 %v1263
    %1894 = vmatprep.subr.bf16.mxu0 %v1268
    %1895 = vmatpush1.bf16.msra.mxu0 %v1267
    %1896 = vmatprep.subr.bf16.mxu0 %v1272
    %1897 = vmatpush1.bf16.msra.mxu0 %v1271
    %1898 = vmatprep.subr.bf16.mxu0 %v1276
    %1899 = vmatpush1.bf16.msra.mxu0 %v1275
    %1900 = vmatprep.subr.bf16.mxu0 %v1280
    %1901 = vmatpush1.bf16.msra.mxu0 %v1279
    %1902 = vmatprep.mubr.bf16.mxu0 %v124
    %1903 = vmatmul.mubr.bf16.gmra.mrb[0].mxu0 %v123
    %v1904 = vpop.f32.mrb[0].mxu0
    %v1905 = vadd.f32 %v1864, %v1904
    %v1906 = vpop.f32.mrb[0].mxu0
    %v1907 = vadd.f32 %v1866, %v1906
    %v1908 = vpop.f32.mrb[0].mxu0
    %v1909 = vpop.f32.mrb[0].mxu0
    %1910 = vdwg.mxu0
    %1911 = vmatprep.subr.bf16.mxu0 %v1284
    %1912 = vmatpush1.bf16.msra.mxu0 %v1283
    %1913 = vmatprep.subr.bf16.mxu0 %v1288
    %1914 = vmatpush1.bf16.msra.mxu0 %v1287
    %1915 = vmatprep.subr.bf16.mxu0 %v1292
    %1916 = vmatpush1.bf16.msra.mxu0 %v1291
    %1917 = vmatprep.subr.bf16.mxu0 %v1296
    %1918 = vmatpush1.bf16.msra.mxu0 %v1295
    %1919 = vmatprep.subr.bf16.mxu0 %v1300
    %1920 = vmatpush1.bf16.msra.mxu0 %v1299
    %1921 = vmatprep.subr.bf16.mxu0 %v1304
    %1922 = vmatpush1.bf16.msra.mxu0 %v1303
    %1923 = vmatprep.subr.bf16.mxu0 %v1308
    %1924 = vmatpush1.bf16.msra.mxu0 %v1307
    %1925 = vmatprep.subr.bf16.mxu0 %v1312
    %1926 = vmatpush1.bf16.msra.mxu0 %v1311
    %1927 = vmatprep.subr.bf16.mxu0 %v1316
    %1928 = vmatpush1.bf16.msra.mxu0 %v1315
    %1929 = vmatprep.subr.bf16.mxu0 %v1320
    %1930 = vmatpush1.bf16.msra.mxu0 %v1319
    %1931 = vmatprep.subr.bf16.mxu0 %v1324
    %1932 = vmatpush1.bf16.msra.mxu0 %v1323
    %1933 = vmatprep.subr.bf16.mxu0 %v1328
    %1934 = vmatpush1.bf16.msra.mxu0 %v1327
    %1935 = vmatprep.subr.bf16.mxu0 %v1332
    %1936 = vmatpush1.bf16.msra.mxu0 %v1331
    %1937 = vmatprep.subr.bf16.mxu0 %v1336
    %1938 = vmatpush1.bf16.msra.mxu0 %v1335
    %1939 = vmatprep.subr.bf16.mxu0 %v1340
    %1940 = vmatpush1.bf16.msra.mxu0 %v1339
    %1941 = vmatprep.subr.bf16.mxu0 %v1344
    %1942 = vmatpush1.bf16.msra.mxu0 %v1343
    %1943 = vmatprep.mubr.bf16.mxu0 %v126
    %1944 = vmatmul.mubr.bf16.gmra.mrb[0].mxu0 %v125
    %v1945 = vpop.f32.mrb[0].mxu0
    %v1946 = vadd.f32 %v1905, %v1945
    %v1947 = vpop.f32.mrb[0].mxu0
    %v1948 = vadd.f32 %v1907, %v1947
    %v1949 = vpop.f32.mrb[0].mxu0
    %v1950 = vpop.f32.mrb[0].mxu0
    %1951 = vdwg.mxu0
    %1952 = vmatprep.subr.bf16.mxu0 %v1348
    %1953 = vmatpush1.bf16.msra.mxu0 %v1347
    %1954 = vmatprep.subr.bf16.mxu0 %v1352
    %1955 = vmatpush1.bf16.msra.mxu0 %v1351
    %1956 = vmatprep.subr.bf16.mxu0 %v1356
    %1957 = vmatpush1.bf16.msra.mxu0 %v1355
    %1958 = vmatprep.subr.bf16.mxu0 %v1360
    %1959 = vmatpush1.bf16.msra.mxu0 %v1359
    %1960 = vmatprep.subr.bf16.mxu0 %v1364
    %1961 = vmatpush1.bf16.msra.mxu0 %v1363
    %1962 = vmatprep.subr.bf16.mxu0 %v1368
    %1963 = vmatpush1.bf16.msra.mxu0 %v1367
    %1964 = vmatprep.subr.bf16.mxu0 %v1372
    %1965 = vmatpush1.bf16.msra.mxu0 %v1371
    %1966 = vmatprep.subr.bf16.mxu0 %v1376
    %1967 = vmatpush1.bf16.msra.mxu0 %v1375
    %1968 = vmatprep.subr.bf16.mxu0 %v1380
    %1969 = vmatpush1.bf16.msra.mxu0 %v1379
    %1970 = vmatprep.subr.bf16.mxu0 %v1384
    %1971 = vmatpush1.bf16.msra.mxu0 %v1383
    %1972 = vmatprep.subr.bf16.mxu0 %v1388
    %1973 = vmatpush1.bf16.msra.mxu0 %v1387
    %1974 = vmatprep.subr.bf16.mxu0 %v1392
    %1975 = vmatpush1.bf16.msra.mxu0 %v1391
    %1976 = vmatprep.subr.bf16.mxu0 %v1396
    %1977 = vmatpush1.bf16.msra.mxu0 %v1395
    %1978 = vmatprep.subr.bf16.mxu0 %v1400
    %1979 = vmatpush1.bf16.msra.mxu0 %v1399
    %1980 = vmatprep.subr.bf16.mxu0 %v1404
    %1981 = vmatpush1.bf16.msra.mxu0 %v1403
    %1982 = vmatprep.subr.bf16.mxu0 %v1408
    %1983 = vmatpush1.bf16.msra.mxu0 %v1407
    %1984 = vmatprep.mubr.bf16.mxu0 %v128
    %1985 = vmatmul.mubr.bf16.gmra.mrb[0].mxu0 %v127
    %v1986 = vpop.f32.mrb[0].mxu0
    %v1987 = vadd.f32 %v1946, %v1986
    %v1988 = vpop.f32.mrb[0].mxu0
    %v1989 = vadd.f32 %v1948, %v1988
    %v1990 = vpop.f32.mrb[0].mxu0
    %v1991 = vpop.f32.mrb[0].mxu0
    %1992 = vdwg.mxu0
    %v1993 = vld [vmem:[%s2] sm:$0xf]
    %v1994 = vld [vmem:[%s3] sm:$0xf]
    %v1995 = vrot.slane %v1823, 4
    %v1996 = vadd.f32 %v1823, %v1995
    %v1997 = vrot.slane %v1996, 2
    %v1998 = vadd.f32 %v1996, %v1997
    %v1999 = vrot.slane %v1998, 1
    %v2000 = vadd.f32 %v1998, %v1999
    %v2001 = vrot.slane %v1825, 4
    %v2002 = vadd.f32 %v1825, %v2001
    %v2003 = vrot.slane %v2002, 2
    %v2004 = vadd.f32 %v2002, %v2003
    %v2005 = vrot.slane %v2004, 1
    %v2006 = vadd.f32 %v2004, %v2005
    %v2007 = vrot.slane %v1987, 4
    %v2008 = vadd.f32 %v1987, %v2007
    %v2009 = vrot.slane %v2008, 2
    %v2010 = vadd.f32 %v2008, %v2009
    %v2011 = vrot.slane %v2010, 1
    %v2012 = vadd.f32 %v2010, %v2011
    %v2013 = vrot.slane %v1989, 4
    %v2014 = vadd.f32 %v1989, %v2013
    %v2015 = vrot.slane %v2014, 2
    %v2016 = vadd.f32 %v2014, %v2015
    %v2017 = vrot.slane %v2016, 1
    %v2018 = vadd.f32 %v2016, %v2017
    %v2019 = vrcp.pop 8.0
    %v2020 = vmul.f32 %v2000, %v2019
    %v2021 = vmul.f32 %v2006, %v2019
    %v2022 = vmul.f32 %v2012, %v2019
    %v2023 = vmul.f32 %v2018, %v2019
    %v2024 = vsub.f32 %v1823, %v2020
    %v2025 = vsub.f32 %v1825, %v2021
    %v2026 = vsub.f32 %v1987, %v2022
    %v2027 = vsub.f32 %v1989, %v2023
    %v2028 = vmul.f32 %v2024, %v2024
    %v2029 = vmul.f32 %v2025, %v2025
    %v2030 = vmul.f32 %v2026, %v2026
    %v2031 = vmul.f32 %v2027, %v2027
    %v2032 = vrot.slane %v2028, 4
    %v2033 = vadd.f32 %v2028, %v2032
    %v2034 = vrot.slane %v2033, 2
    %v2035 = vadd.f32 %v2033, %v2034
    %v2036 = vrot.slane %v2035, 1
    %v2037 = vadd.f32 %v2035, %v2036
    %v2038 = vrot.slane %v2029, 4
    %v2039 = vadd.f32 %v2029, %v2038
    %v2040 = vrot.slane %v2039, 2
    %v2041 = vadd.f32 %v2039, %v2040
    %v2042 = vrot.slane %v2041, 1
    %v2043 = vadd.f32 %v2041, %v2042
    %v2044 = vrot.slane %v2030, 4
    %v2045 = vadd.f32 %v2030, %v2044
    %v2046 = vrot.slane %v2045, 2
    %v2047 = vadd.f32 %v2045, %v2046
    %v2048 = vrot.slane %v2047, 1
    %v2049 = vadd.f32 %v2047, %v2048
    %v2050 = vrot.slane %v2031, 4
    %v2051 = vadd.f32 %v2031, %v2050
    %v2052 = vrot.slane %v2051, 2
    %v2053 = vadd.f32 %v2051, %v2052
    %v2054 = vrot.slane %v2053, 1
    %v2055 = vadd.f32 %v2053, %v2054
    %v2056 = vmul.f32 %v2037, %v2019
    %v2057 = vmul.f32 %v2043, %v2019
    %v2058 = vmul.f32 %v2049, %v2019
    %v2059 = vmul.f32 %v2055, %v2019
    %v2060 = vadd.f32 %v2056, 1e-05
    %v2061 = vadd.f32 %v2057, 1e-05
    %v2062 = vadd.f32 %v2058, 1e-05
    %v2063 = vadd.f32 %v2059, 1e-05
    %v2064 = vrsqrt.pop %v2060
    %v2065 = vrsqrt.pop %v2061
    %v2066 = vrsqrt.pop %v2062
    %v2067 = vrsqrt.pop %v2063
    %v2072 = vcombine.low %v2064, %v2065
    %v2073 = vcombine.low %v2066, %v2067
    %v2075 = vunpack.c.l.s4 1966171168
    %v2076 = vunpack.c.0.s8 %v2075
    %v2077 = vlaneseq
    %v2078 = vshrl.u32 %v2077, 7
    %v2079 = vsub.s32 %v2076, %v2078
    %v2080 = vrot.slane %v2072, %v2079
    %v2082 = vunpack.c.l.s4 1966171168
    %v2083 = vunpack.c.0.s8 %v2082
    %v2084 = vlaneseq
    %v2085 = vshrl.u32 %v2084, 7
    %v2086 = vsub.s32 %v2083, %v2085
    %v2087 = vrot.slane %v2073, %v2086
    %v2088 = vcombine.low %v2080, %v2087
    %v2090 = vunpack.c.l.s4 1966171168
    %v2091 = vunpack.c.0.s8 %v2090
    %v2092 = vlaneseq
    %v2093 = vshrl.u32 %v2092, 7
    %v2094 = vsub.s32 %v2091, %v2093
    %v2095 = vrot.slane %v2088, %v2094
    %v2097 = vmul.f32 %v1993, %v2095
    %v2099 = vlaneseq
    %v2100 = vshrl.u32 %v2099, 7
    %v2101 = vsub.s32 0, %v2100
    %v2102 = vrot.slane %v2097, %v2101
    %v2103 = vlaneseq
    %v2104 = vshrl.u32 %v2103, 7
    %v2105 = vsub.s32 1, %v2104
    %v2106 = vrot.slane %v2097, %v2105
    %v2107 = vlaneseq
    %v2108 = vshrl.u32 %v2107, 7
    %v2109 = vsub.s32 2, %v2108
    %v2110 = vrot.slane %v2097, %v2109
    %v2111 = vlaneseq
    %v2112 = vshrl.u32 %v2111, 7
    %v2113 = vsub.s32 3, %v2112
    %v2114 = vrot.slane %v2097, %v2113
    %v2119 = vmul.f32 %v2024, %v2102
    %v2120 = vmul.f32 %v2025, %v2106
    %v2121 = vmul.f32 %v2026, %v2110
    %v2122 = vmul.f32 %v2027, %v2114
    %v2124 = vlaneseq
    %v2125 = vshrl.u32 %v2124, 7
    %v2126 = vsub.s32 0, %v2125
    %v2127 = vrot.slane %v1994, %v2126
    %v2128 = vlaneseq
    %v2129 = vshrl.u32 %v2128, 7
    %v2130 = vsub.s32 1, %v2129
    %v2131 = vrot.slane %v1994, %v2130
    %v2132 = vlaneseq
    %v2133 = vshrl.u32 %v2132, 7
    %v2134 = vsub.s32 2, %v2133
    %v2135 = vrot.slane %v1994, %v2134
    %v2136 = vlaneseq
    %v2137 = vshrl.u32 %v2136, 7
    %v2138 = vsub.s32 3, %v2137
    %v2139 = vrot.slane %v1994, %v2138
    %v2144 = vadd.f32 %v2119, %v2127
    %v2145 = vadd.f32 %v2120, %v2131
    %v2146 = vadd.f32 %v2121, %v2135
    %v2147 = vadd.f32 %v2122, %v2139
    %v2148 = vmax.f32 %v2144, 0.0
    %v2149 = vmax.f32 %v2145, 0.0
    %v2150 = vmax.f32 %v2146, 0.0
    %v2151 = vmax.f32 %v2147, 0.0
    %s2152 = smul.u32 4, 64
    %s2153 = smul.u32 %s2152, 2
    %s2154 = sshll.u32 %s2153, 4
    %2155 = dma.done [#allocation4], %s2154
    %v2156 = vpack.c.bf16 %v2148, %v2148
    %v2157 = vpack.c.bf16 %v2149, %v2149
    %v2158 = vpack.c.bf16 %v2150, %v2150
    %v2159 = vpack.c.bf16 %v2151, %v2151
    %v2160 = vld [vmem:[#allocation2] sm:$0xff]
    %v2161 = vld [vmem:[#allocation2 + $0x8] sm:$0xff]
    %v2162 = vld [vmem:[#allocation2 + $0x10] sm:$0xff]
    %v2163 = vld [vmem:[#allocation2 + $0x18] sm:$0xff]
    %v2164 = vld [vmem:[#allocation2 + $0x20] sm:$0xff]
    %v2165 = vld [vmem:[#allocation2 + $0x28] sm:$0xff]
    %v2166 = vld [vmem:[#allocation2 + $0x30] sm:$0xff]
    %v2167 = vld [vmem:[#allocation2 + $0x38] sm:$0xff]
    %v2168 = vld [vmem:[#allocation2 + $0x40] sm:$0xff]
    %v2169 = vld [vmem:[#allocation2 + $0x48] sm:$0xff]
    %v2170 = vld [vmem:[#allocation2 + $0x50] sm:$0xff]
    %v2171 = vld [vmem:[#allocation2 + $0x58] sm:$0xff]
    %v2172 = vld [vmem:[#allocation2 + $0x60] sm:$0xff]
    %v2173 = vld [vmem:[#allocation2 + $0x68] sm:$0xff]
    %v2174 = vld [vmem:[#allocation2 + $0x70] sm:$0xff]
    %v2175 = vld [vmem:[#allocation2 + $0x78] sm:$0xff]
    %v2176 = vld [vmem:[#allocation2 + $0x80] sm:$0xff]
    %v2177 = vld [vmem:[#allocation2 + $0x88] sm:$0xff]
    %v2178 = vld [vmem:[#allocation2 + $0x90] sm:$0xff]
    %v2179 = vld [vmem:[#allocation2 + $0x98] sm:$0xff]
    %v2180 = vld [vmem:[#allocation2 + $0xa0] sm:$0xff]
    %v2181 = vld [vmem:[#allocation2 + $0xa8] sm:$0xff]
    %v2182 = vld [vmem:[#allocation2 + $0xb0] sm:$0xff]
    %v2183 = vld [vmem:[#allocation2 + $0xb8] sm:$0xff]
    %v2184 = vld [vmem:[#allocation2 + $0xc0] sm:$0xff]
    %v2185 = vld [vmem:[#allocation2 + $0xc8] sm:$0xff]
    %v2186 = vld [vmem:[#allocation2 + $0xd0] sm:$0xff]
    %v2187 = vld [vmem:[#allocation2 + $0xd8] sm:$0xff]
    %v2188 = vld [vmem:[#allocation2 + $0xe0] sm:$0xff]
    %v2189 = vld [vmem:[#allocation2 + $0xe8] sm:$0xff]
    %v2190 = vld [vmem:[#allocation2 + $0xf0] sm:$0xff]
    %v2191 = vld [vmem:[#allocation2 + $0xf8] sm:$0xff]
    %v2192 = vld [vmem:[#allocation2 + $0x100] sm:$0xff]
    %v2193 = vld [vmem:[#allocation2 + $0x108] sm:$0xff]
    %v2194 = vld [vmem:[#allocation2 + $0x110] sm:$0xff]
    %v2195 = vld [vmem:[#allocation2 + $0x118] sm:$0xff]
    %v2196 = vld [vmem:[#allocation2 + $0x120] sm:$0xff]
    %v2197 = vld [vmem:[#allocation2 + $0x128] sm:$0xff]
    %v2198 = vld [vmem:[#allocation2 + $0x130] sm:$0xff]
    %v2199 = vld [vmem:[#allocation2 + $0x138] sm:$0xff]
    %v2200 = vld [vmem:[#allocation2 + $0x140] sm:$0xff]
    %v2201 = vld [vmem:[#allocation2 + $0x148] sm:$0xff]
    %v2202 = vld [vmem:[#allocation2 + $0x150] sm:$0xff]
    %v2203 = vld [vmem:[#allocation2 + $0x158] sm:$0xff]
    %v2204 = vld [vmem:[#allocation2 + $0x160] sm:$0xff]
    %v2205 = vld [vmem:[#allocation2 + $0x168] sm:$0xff]
    %v2206 = vld [vmem:[#allocation2 + $0x170] sm:$0xff]
    %v2207 = vld [vmem:[#allocation2 + $0x178] sm:$0xff]
    %v2208 = vld [vmem:[#allocation2 + $0x180] sm:$0xff]
    %v2209 = vld [vmem:[#allocation2 + $0x188] sm:$0xff]
    %v2210 = vld [vmem:[#allocation2 + $0x190] sm:$0xff]
    %v2211 = vld [vmem:[#allocation2 + $0x198] sm:$0xff]
    %v2212 = vld [vmem:[#allocation2 + $0x1a0] sm:$0xff]
    %v2213 = vld [vmem:[#allocation2 + $0x1a8] sm:$0xff]
    %v2214 = vld [vmem:[#allocation2 + $0x1b0] sm:$0xff]
    %v2215 = vld [vmem:[#allocation2 + $0x1b8] sm:$0xff]
    %v2216 = vld [vmem:[#allocation2 + $0x1c0] sm:$0xff]
    %v2217 = vld [vmem:[#allocation2 + $0x1c8] sm:$0xff]
    %v2218 = vld [vmem:[#allocation2 + $0x1d0] sm:$0xff]
    %v2219 = vld [vmem:[#allocation2 + $0x1d8] sm:$0xff]
    %v2220 = vld [vmem:[#allocation2 + $0x1e0] sm:$0xff]
    %v2221 = vld [vmem:[#allocation2 + $0x1e8] sm:$0xff]
    %v2222 = vld [vmem:[#allocation2 + $0x1f0] sm:$0xff]
    %v2223 = vld [vmem:[#allocation2 + $0x1f8] sm:$0xff]
    %2224 = vmatprep.subr.bf16.mxu0 %v2161
    %2225 = vmatpush1.bf16.msra.mxu0 %v2160
    %2226 = vmatprep.subr.bf16.mxu0 %v2163
    %2227 = vmatpush1.bf16.msra.mxu0 %v2162
    %2228 = vmatprep.subr.bf16.mxu0 %v2165
    %2229 = vmatpush1.bf16.msra.mxu0 %v2164
    %2230 = vmatprep.subr.bf16.mxu0 %v2167
    %2231 = vmatpush1.bf16.msra.mxu0 %v2166
    %2232 = vmatprep.subr.bf16.mxu0 %v2169
    %2233 = vmatpush1.bf16.msra.mxu0 %v2168
    %2234 = vmatprep.subr.bf16.mxu0 %v2171
    %2235 = vmatpush1.bf16.msra.mxu0 %v2170
    %2236 = vmatprep.subr.bf16.mxu0 %v2173
    %2237 = vmatpush1.bf16.msra.mxu0 %v2172
    %2238 = vmatprep.subr.bf16.mxu0 %v2175
    %2239 = vmatpush1.bf16.msra.mxu0 %v2174
    %2240 = vmatprep.subr.bf16.mxu0 %v2177
    %2241 = vmatpush1.bf16.msra.mxu0 %v2176
    %2242 = vmatprep.subr.bf16.mxu0 %v2179
    %2243 = vmatpush1.bf16.msra.mxu0 %v2178
    %2244 = vmatprep.subr.bf16.mxu0 %v2181
    %2245 = vmatpush1.bf16.msra.mxu0 %v2180
    %2246 = vmatprep.subr.bf16.mxu0 %v2183
    %2247 = vmatpush1.bf16.msra.mxu0 %v2182
    %2248 = vmatprep.subr.bf16.mxu0 %v2185
    %2249 = vmatpush1.bf16.msra.mxu0 %v2184
    %2250 = vmatprep.subr.bf16.mxu0 %v2187
    %2251 = vmatpush1.bf16.msra.mxu0 %v2186
    %2252 = vmatprep.subr.bf16.mxu0 %v2189
    %2253 = vmatpush1.bf16.msra.mxu0 %v2188
    %2254 = vmatprep.subr.bf16.mxu0 %v2191
    %2255 = vmatpush1.bf16.msra.mxu0 %v2190
    %2256 = vmatprep.mubr.bf16.mxu0 %v2157
    %2257 = vmatmul.mubr.bf16.gmra.mrb[0].mxu0 %v2156
    %v2258 = vpop.f32.mrb[0].mxu0
    %v2259 = vadd.f32 0.0, %v2258
    %v2260 = vpop.f32.mrb[0].mxu0
    %v2261 = vadd.f32 0.0, %v2260
    %v2262 = vpop.f32.mrb[0].mxu0
    %v2263 = vpop.f32.mrb[0].mxu0
    %2264 = vdwg.mxu0
    %2265 = vmatprep.subr.bf16.mxu0 %v2193
    %2266 = vmatpush1.bf16.msra.mxu0 %v2192
    %2267 = vmatprep.subr.bf16.mxu0 %v2195
    %2268 = vmatpush1.bf16.msra.mxu0 %v2194
    %2269 = vmatprep.subr.bf16.mxu0 %v2197
    %2270 = vmatpush1.bf16.msra.mxu0 %v2196
    %2271 = vmatprep.subr.bf16.mxu0 %v2199
    %2272 = vmatpush1.bf16.msra.mxu0 %v2198
    %2273 = vmatprep.subr.bf16.mxu0 %v2201
    %2274 = vmatpush1.bf16.msra.mxu0 %v2200
    %2275 = vmatprep.subr.bf16.mxu0 %v2203
    %2276 = vmatpush1.bf16.msra.mxu0 %v2202
    %2277 = vmatprep.subr.bf16.mxu0 %v2205
    %2278 = vmatpush1.bf16.msra.mxu0 %v2204
    %2279 = vmatprep.subr.bf16.mxu0 %v2207
    %2280 = vmatpush1.bf16.msra.mxu0 %v2206
    %2281 = vmatprep.subr.bf16.mxu0 %v2209
    %2282 = vmatpush1.bf16.msra.mxu0 %v2208
    %2283 = vmatprep.subr.bf16.mxu0 %v2211
    %2284 = vmatpush1.bf16.msra.mxu0 %v2210
    %2285 = vmatprep.subr.bf16.mxu0 %v2213
    %2286 = vmatpush1.bf16.msra.mxu0 %v2212
    %2287 = vmatprep.subr.bf16.mxu0 %v2215
    %2288 = vmatpush1.bf16.msra.mxu0 %v2214
    %2289 = vmatprep.subr.bf16.mxu0 %v2217
    %2290 = vmatpush1.bf16.msra.mxu0 %v2216
    %2291 = vmatprep.subr.bf16.mxu0 %v2219
    %2292 = vmatpush1.bf16.msra.mxu0 %v2218
    %2293 = vmatprep.subr.bf16.mxu0 %v2221
    %2294 = vmatpush1.bf16.msra.mxu0 %v2220
    %2295 = vmatprep.subr.bf16.mxu0 %v2223
    %2296 = vmatpush1.bf16.msra.mxu0 %v2222
    %2297 = vmatprep.mubr.bf16.mxu0 %v2159
    %2298 = vmatmul.mubr.bf16.gmra.mrb[0].mxu0 %v2158
    %v2299 = vpop.f32.mrb[0].mxu0
    %v2300 = vadd.f32 %v2259, %v2299
    %v2301 = vpop.f32.mrb[0].mxu0
    %v2302 = vadd.f32 %v2261, %v2301
    %v2303 = vpop.f32.mrb[0].mxu0
    %v2304 = vpop.f32.mrb[0].mxu0
    %2305 = vdwg.mxu0
    %v2306 = vld [vmem:[%s5] sm:$0x3]
    %v2307 = vld [vmem:[%s6] sm:$0x3]
    %v2308 = vrot.slane %v2300, 4
    %v2309 = vadd.f32 %v2300, %v2308
    %v2310 = vrot.slane %v2309, 2
    %v2311 = vadd.f32 %v2309, %v2310
    %v2312 = vrot.slane %v2311, 1
    %v2313 = vadd.f32 %v2311, %v2312
    %v2314 = vrot.slane %v2302, 4
    %v2315 = vadd.f32 %v2302, %v2314
    %v2316 = vrot.slane %v2315, 2
    %v2317 = vadd.f32 %v2315, %v2316
    %v2318 = vrot.slane %v2317, 1
    %v2319 = vadd.f32 %v2317, %v2318
    %v2320 = vmul.f32 %v2313, %v2019
    %v2321 = vmul.f32 %v2319, %v2019
    %v2322 = vsub.f32 %v2300, %v2320
    %v2323 = vsub.f32 %v2302, %v2321
    %v2324 = vmul.f32 %v2322, %v2322
    %v2325 = vmul.f32 %v2323, %v2323
    %v2326 = vrot.slane %v2324, 4
    %v2327 = vadd.f32 %v2324, %v2326
    %v2328 = vrot.slane %v2327, 2
    %v2329 = vadd.f32 %v2327, %v2328
    %v2330 = vrot.slane %v2329, 1
    %v2331 = vadd.f32 %v2329, %v2330
    %v2332 = vrot.slane %v2325, 4
    %v2333 = vadd.f32 %v2325, %v2332
    %v2334 = vrot.slane %v2333, 2
    %v2335 = vadd.f32 %v2333, %v2334
    %v2336 = vrot.slane %v2335, 1
    %v2337 = vadd.f32 %v2335, %v2336
    %v2338 = vmul.f32 %v2331, %v2019
    %v2339 = vmul.f32 %v2337, %v2019
    %v2340 = vadd.f32 %v2338, 1e-05
    %v2341 = vadd.f32 %v2339, 1e-05
    %v2342 = vrsqrt.pop %v2340
    %v2343 = vrsqrt.pop %v2341
    %v2346 = vcombine.low %v2342, %v2343
    %v2348 = vunpack.c.l.s4 1966171168
    %v2349 = vunpack.c.0.s8 %v2348
    %v2350 = vlaneseq
    %v2351 = vshrl.u32 %v2350, 7
    %v2352 = vsub.s32 %v2349, %v2351
    %v2353 = vrot.slane %v2346, %v2352
    %v2355 = vunpack.c.l.s4 1966171168
    %v2356 = vunpack.c.0.s8 %v2355
    %v2357 = vlaneseq
    %v2358 = vshrl.u32 %v2357, 7
    %v2359 = vsub.s32 %v2356, %v2358
    %v2360 = vrot.slane %v2353, %v2359
    %v2362 = vmul.f32 %v2306, %v2360
    %v2364 = vlaneseq
    %v2365 = vshrl.u32 %v2364, 7
    %v2366 = vsub.s32 0, %v2365
    %v2367 = vrot.slane %v2362, %v2366
    %v2368 = vlaneseq
    %v2369 = vshrl.u32 %v2368, 7
    %v2370 = vsub.s32 1, %v2369
    %v2371 = vrot.slane %v2362, %v2370
    %v2374 = vmul.f32 %v2322, %v2367
    %v2375 = vmul.f32 %v2323, %v2371
    %v2377 = vlaneseq
    %v2378 = vshrl.u32 %v2377, 7
    %v2379 = vsub.s32 0, %v2378
    %v2380 = vrot.slane %v2307, %v2379
    %v2381 = vlaneseq
    %v2382 = vshrl.u32 %v2381, 7
    %v2383 = vsub.s32 1, %v2382
    %v2384 = vrot.slane %v2307, %v2383
    %v2387 = vadd.f32 %v2374, %v2380
    %v2388 = vadd.f32 %v2375, %v2384
    %v2389 = vmax.f32 %v2387, 0.0
    %v2390 = vmax.f32 %v2388, 0.0
    %s2391 = smul.u32 4, 32
    %s2392 = smul.u32 %s2391, 1
    %s2393 = sshll.u32 %s2392, 4
    %2394 = dma.done %s101, %s2393
    %v2395 = vpack.c.bf16 %v2389, %v2389
    %v2396 = vpack.c.bf16 %v2390, %v2390
    %v2397 = vld [vmem:[#allocation3] sm:$0xff]
    %v2398 = vld [vmem:[#allocation3 + $0x8] sm:$0xff]
    %v2399 = vld [vmem:[#allocation3 + $0x10] sm:$0xff]
    %v2400 = vld [vmem:[#allocation3 + $0x18] sm:$0xff]
    %v2401 = vld [vmem:[#allocation3 + $0x20] sm:$0xff]
    %v2402 = vld [vmem:[#allocation3 + $0x28] sm:$0xff]
    %v2403 = vld [vmem:[#allocation3 + $0x30] sm:$0xff]
    %v2404 = vld [vmem:[#allocation3 + $0x38] sm:$0xff]
    %v2405 = vld [vmem:[#allocation3 + $0x40] sm:$0xff]
    %v2406 = vld [vmem:[#allocation3 + $0x48] sm:$0xff]
    %v2407 = vld [vmem:[#allocation3 + $0x50] sm:$0xff]
    %v2408 = vld [vmem:[#allocation3 + $0x58] sm:$0xff]
    %v2409 = vld [vmem:[#allocation3 + $0x60] sm:$0xff]
    %v2410 = vld [vmem:[#allocation3 + $0x68] sm:$0xff]
    %v2411 = vld [vmem:[#allocation3 + $0x70] sm:$0xff]
    %v2412 = vld [vmem:[#allocation3 + $0x78] sm:$0xff]
    %2413 = vmatprep.subr.bf16.mxu0 0
    %2414 = vmatpush1.bf16.msra.mxu0 %v2397
    %2415 = vmatprep.subr.bf16.mxu0 0
    %2416 = vmatpush1.bf16.msra.mxu0 %v2398
    %2417 = vmatprep.subr.bf16.mxu0 0
    %2418 = vmatpush1.bf16.msra.mxu0 %v2399
    %2419 = vmatprep.subr.bf16.mxu0 0
    %2420 = vmatpush1.bf16.msra.mxu0 %v2400
    %2421 = vmatprep.subr.bf16.mxu0 0
    %2422 = vmatpush1.bf16.msra.mxu0 %v2401
    %2423 = vmatprep.subr.bf16.mxu0 0
    %2424 = vmatpush1.bf16.msra.mxu0 %v2402
    %2425 = vmatprep.subr.bf16.mxu0 0
    %2426 = vmatpush1.bf16.msra.mxu0 %v2403
    %2427 = vmatprep.subr.bf16.mxu0 0
    %2428 = vmatpush1.bf16.msra.mxu0 %v2404
    %2429 = vmatprep.subr.bf16.mxu0 0
    %2430 = vmatpush1.bf16.msra.mxu0 %v2405
    %2431 = vmatprep.subr.bf16.mxu0 0
    %2432 = vmatpush1.bf16.msra.mxu0 %v2406
    %2433 = vmatprep.subr.bf16.mxu0 0
    %2434 = vmatpush1.bf16.msra.mxu0 %v2407
    %2435 = vmatprep.subr.bf16.mxu0 0
    %2436 = vmatpush1.bf16.msra.mxu0 %v2408
    %2437 = vmatprep.subr.bf16.mxu0 0
    %2438 = vmatpush1.bf16.msra.mxu0 %v2409
    %2439 = vmatprep.subr.bf16.mxu0 0
    %2440 = vmatpush1.bf16.msra.mxu0 %v2410
    %2441 = vmatprep.subr.bf16.mxu0 0
    %2442 = vmatpush1.bf16.msra.mxu0 %v2411
    %2443 = vmatprep.subr.bf16.mxu0 0
    %2444 = vmatpush1.bf16.msra.mxu0 %v2412
    %2445 = vmatprep.mubr.bf16.mxu0 %v2396
    %2446 = vmatmul.mubr.bf16.gmra.mrb[0].mxu0 %v2395
    %v2447 = vpop.f32.mrb[0].mxu0
    %v2448 = vadd.f32 0.0, %v2447
    %v2449 = vpop.f32.mrb[0].mxu0
    %v2450 = vpop.f32.mrb[0].mxu0
    %v2451 = vpop.f32.mrb[0].mxu0
    %2452 = vdwg.mxu0
    %v2453 = vld [vmem:[%s8] sm:$0x1]
    %v2454 = vld [vmem:[%s9] sm:$0x1]
    %v2455 = vrot.slane %v2448, 4
    %v2456 = vadd.f32 %v2448, %v2455
    %v2457 = vrot.slane %v2456, 2
    %v2458 = vadd.f32 %v2456, %v2457
    %v2459 = vrot.slane %v2458, 1
    %v2460 = vadd.f32 %v2458, %v2459
    %v2461 = vmul.f32 %v2460, %v2019
    %v2462 = vsub.f32 %v2448, %v2461
    %v2463 = vmul.f32 %v2462, %v2462
    %v2464 = vrot.slane %v2463, 4
    %v2465 = vadd.f32 %v2463, %v2464
    %v2466 = vrot.slane %v2465, 2
    %v2467 = vadd.f32 %v2465, %v2466
    %v2468 = vrot.slane %v2467, 1
    %v2469 = vadd.f32 %v2467, %v2468
    %v2470 = vmul.f32 %v2469, %v2019
    %v2471 = vadd.f32 %v2470, 1e-05
    %v2472 = vrsqrt.pop %v2471
    %v2473 = vmul.f32 %v2453, %v2472
    %v2475 = vlaneseq
    %v2476 = vshrl.u32 %v2475, 7
    %v2477 = vsub.s32 0, %v2476
    %v2478 = vrot.slane %v2473, %v2477
    %v2480 = vmul.f32 %v2462, %v2478
    %v2482 = vlaneseq
    %v2483 = vshrl.u32 %v2482, 7
    %v2484 = vsub.s32 0, %v2483
    %v2485 = vrot.slane %v2454, %v2484
    %v2487 = vadd.f32 %v2480, %v2485
    %v2488 = vmax.f32 %v2487, 0.0
    %v2489 = vld [vmem:[%s10] sm:$0x1]
    %v2491 = vlaneseq
    %v2492 = vshrl.u32 %v2491, 7
    %v2493 = vsub.s32 0, %v2492
    %v2494 = vrot.slane %v2489, %v2493
    %v2496 = vmul.f32 %v2488, %v2494
    %2497 = vadd.xlane.f32.xlu0 %v2496
    %v2498 = vpop.xlane.xlu0 %2497
    %v2499 = vld [vmem:[#allocation5] sm:$0x1]
    %v2501 = vlaneseq
    %v2502 = vshrl.u32 %v2501, 7
    %v2503 = vsub.s32 0, %v2502
    %v2504 = vrot.slane %v2499, %v2503
    %v2506 = vadd.f32 %v2498, %v2504
    %v2507 = vxor.u32 %v2506, 2147483648
    %v2508 = vmul.f32 %v2507, 1.442695
    %v2509 = vpow.pop %v2508
    %v2510 = vadd.f32 %v2509, 1.0
    %v2511 = vrcp.pop %v2510
    %v2512 = vmul.f32 1.0, %v2511
    %vm2513 = vcmask 7168
    %2514 = vst.msk [vmem:[%s12] sm:$0xff] %vm2513, %v2512
    // Predicated region
    $region54: #{tpu_custom_call.1} parent=1 // pred_check
      _
    $region55: #{tpu_custom_call.1} parent=1 // pred_check_branch
      %2516 = sbr.rel (0) target = $region57
    $region56: #{tpu_custom_call.1} parent=1 // pred_region
      _
    $region57: #{tpu_custom_call.1} parent=1 // pred_fallthru
      _
    // Predicated region
    $region58: #{tpu_custom_call.1} parent=1 // pred_check
      _
    $region59: #{tpu_custom_call.1} parent=1 // pred_check_branch
      %2518 = sbr.rel (0) target = $region61
    $region60: #{tpu_custom_call.1} parent=1 // pred_region
      _
    $region61: #{tpu_custom_call.1} parent=1 // pred_fallthru
      _
    %2519 = vsyncpa [#allocation7], 1
    %2520 = vsyncpa [#allocation9], 1
  %2521 = vsyncmov [#allocation4]
  %s2522 = vpop.sfrf %2521
  %p2523 = scmp.eq.s32.totalorder %s2522, 0
  %p2524 = pneg %p2523
  %2526 = shalt.err (%p2524)
  %s2527 = scalar_lea.sflag [#allocation4], 1
  %2528 = vsyncmov %s2527
  %s2529 = vpop.sfrf %2528
  %p2530 = scmp.eq.s32.totalorder %s2529, 0
  %p2531 = pneg %p2530
  %2533 = shalt.err (%p2531)

</llo_original>
